<compile_context>
chip_gen: v5e
topology: v5e:2x2
jax: 0.10.0
libtpu: 0.0.40
codegen_flags: <defaults>
</compile_context>

<pallas_src>
import functools

import jax
import jax.numpy as jnp
from jax.experimental import pallas as pl
from jax.experimental.pallas import tpu as pltpu


# ----------------------------- Pallas kernels -----------------------------

def _vision_adapter_fuse_kernel(layers_ref,                       # scalar prefetch (SMEM)
                                hs_ref, w1_ref, b1_ref, w2_ref, b2_ref,
                                wf_ref, bf_ref,                   # inputs
                                o_ref,                            # output
                                acc_ref, x_ref):                  # scratch
    """One (adapter a, row-tile r) output block; grid axis 2 = K-reduction
    over the 13 hidden states for the FusionModule matmul:

        out = relu(relu(x@W1+b1)@W2+b2) + x + (sum_s hs[s]@Wf[s] + bf)

    x (== hs[extract_layer[a]+1]) is captured into a VMEM scratch when the
    reduction sweep passes that state, so the shared activation stream is
    read from HBM exactly once (no duplicated x operand).
    """
    a = pl.program_id(0)
    s = pl.program_id(2)

    @pl.when(s == 0)
    def _():
        acc_ref[...] = jnp.zeros_like(acc_ref)

    # Capture the adapter input activation for the finalize step.
    @pl.when(s == layers_ref[a])
    def _():
        x_ref[...] = hs_ref[...]

    # fuse partial sum: hs chunk [tm, V] (bf16) @ Wf chunk [V, V] (bf16) -> f32
    acc_ref[...] += jnp.dot(hs_ref[...], wf_ref[...],
                            preferred_element_type=jnp.float32)

    @pl.when(s == pl.num_programs(2) - 1)
    def _():
        x = x_ref[...]                                            # bf16 [tm, V]
        h = jnp.maximum(
            jnp.dot(x, w1_ref[...], preferred_element_type=jnp.float32)
            + b1_ref[...], 0.0)                                   # f32 [tm, dmid]
        h = jnp.maximum(
            jnp.dot(h.astype(w2_ref.dtype), w2_ref[...],
                    preferred_element_type=jnp.float32)
            + b2_ref[...], 0.0)                                   # f32 [tm, V]
        o_ref[...] = h + x.astype(jnp.float32) + acc_ref[...] + bf_ref[...]


def _cond_path_kernel(pooler_ref, tproj_ref,
                      w1c_ref, b1c_ref, w2c_ref, b2c_ref,
                      hs_ref, w1l_ref, b1l_ref, w2l_ref, b2l_ref,
                      o_ref, *, num_layers):
    """Fused conditional-embedding path:
       cond = adapter_cond(pooler @ text_projection)
       for i: cond += adapter_lang_i(hs_eot[i])
    """
    def adapter(x, w1, b1, w2, b2):
        h = jnp.maximum(
            jnp.dot(x, w1, preferred_element_type=jnp.float32) + b1, 0.0)
        h = jnp.maximum(
            jnp.dot(h, w2, preferred_element_type=jnp.float32) + b2, 0.0)
        return h + x

    cond = jnp.dot(pooler_ref[...], tproj_ref[...],
                   preferred_element_type=jnp.float32)            # [B, P]
    cond = adapter(cond, w1c_ref[...], b1c_ref[...], w2c_ref[...], b2c_ref[...])
    for i in range(num_layers):                                   # static unroll
        x = hs_ref[i]                                             # [B, L]
        cond = cond + adapter(x, w1l_ref[i], b1l_ref[i], w2l_ref[i], b2l_ref[i])
    o_ref[...] = cond


# ------------------------------- wrappers ----------------------------------

def _choose_row_tile(rows: int, max_tm: int = 512) -> int:
    """Largest sublane-aligned row tile <= max_tm that still yields >= 2 row
    tiles (megacore balance on v7x) while amortizing the Wf weight stream."""
    half = -(-rows // 2)                       # ceil(rows / 2)
    tm = min(max_tm, max(half, 8))
    return -(-tm // 8) * 8                     # round up to sublane multiple


def pallas_vision_adapters(vision_hidden, extract_layers, vp, *, max_tm=512):
    """All three vision AdapterModules (hidden_vision_fuse=True) in one call.

    vision_hidden: [13, B, S, V] (f32 or bf16).  Returns [A, B, S, V] f32.
    vp: dict with stacked params: w1 [A,V,dmid] bf16, b1 [A,1,dmid] f32,
        w2 [A,dmid,V] bf16, b2 [A,1,V] f32, wf [A,13V,V] bf16, bf [A,1,V] f32.
    """
    s13, B, S, V = vision_hidden.shape
    A = len(extract_layers)
    dmid = vp["w1"].shape[-1]

    rows = B * S
    vh = vision_hidden.reshape(s13, rows, V)
    if vh.dtype != jnp.bfloat16:
        vh = vh.astype(jnp.bfloat16)

    tm = _choose_row_tile(rows, max_tm)
    nr = pl.cdiv(rows, tm)                     # ragged last block is masked
    layers = jnp.asarray([l + 1 for l in extract_layers], jnp.int32)
    grid = (A, nr, s13)                        # adapter, row tile, state (K)

    # VMEM budget from actual block sizes (double-buffered IO + scratch),
    # with 2x margin, capped well below v7x's 64 MiB physical VMEM.
    blk_bytes = (2 * tm * V * 2                      # hs stream (bf16)
                 + 2 * (V * dmid + dmid * V) * 2     # w1, w2 (bf16)
                 + 2 * V * V * 2                     # Wf chunk (bf16)
                 + 2 * tm * V * 4                    # output (f32)
                 + tm * V * 4 + tm * V * 2           # acc + x scratch
                 + 2 * (dmid + 2 * V) * 4)           # biases
    vmem_limit = int(min(48 * 1024 * 1024,
                         max(8 * 1024 * 1024, 2 * blk_bytes)))

    flops = 2 * A * rows * V * (s13 * V + 2 * dmid)
    bytes_accessed = (A * s13 * rows * V * 2         # activation stream
                      + A * nr * s13 * V * V * 2     # Wf re-streams
                      + A * rows * V * 4             # output
                      + A * 2 * V * dmid * 2)        # adapter weights

    out = pl.pallas_call(
        _vision_adapter_fuse_kernel,
        out_shape=jax.ShapeDtypeStruct((A, rows, V), jnp.float32),
        grid_spec=pltpu.PrefetchScalarGridSpec(
            num_scalar_prefetch=1,
            grid=grid,
            in_specs=[
                # hs: current hidden-state chunk (independent of adapter axis)
                pl.BlockSpec((None, tm, V), lambda a, r, s, L: (s, r, 0)),
                pl.BlockSpec((None, V, dmid), lambda a, r, s, L: (a, 0, 0)),
                pl.BlockSpec((None, 1, dmid), lambda a, r, s, L: (a, 0, 0)),
                pl.BlockSpec((None, dmid, V), lambda a, r, s, L: (a, 0, 0)),
                pl.BlockSpec((None, 1, V), lambda a, r, s, L: (a, 0, 0)),
                # Wf streamed in [V, V] K-chunks (row block s of [13V, V])
                pl.BlockSpec((None, V, V), lambda a, r, s, L: (a, s, 0)),
                pl.BlockSpec((None, 1, V), lambda a, r, s, L: (a, 0, 0)),
            ],
            out_specs=pl.BlockSpec((None, tm, V), lambda a, r, s, L: (a, r, 0)),
            scratch_shapes=[pltpu.VMEM((tm, V), jnp.float32),     # fuse acc
                            pltpu.VMEM((tm, V), jnp.bfloat16)],   # captured x
        ),
        compiler_params=pltpu.CompilerParams(
            dimension_semantics=("parallel", "parallel", "arbitrary"),
            vmem_limit_bytes=vmem_limit,
        ),
        cost_estimate=pl.CostEstimate(flops=int(flops), transcendentals=0,
                                      bytes_accessed=int(bytes_accessed)),
    )(layers, vh, vp["w1"], vp["b1"], vp["w2"], vp["b2"], vp["wf"], vp["bf"])

    return out.reshape(A, B, S, V)


def pallas_cond_path(pooler, hs_eot, params):
    """pooler: [B, L]; hs_eot: [A, B, L] (EOT-gathered text hidden states)."""
    B, L = pooler.shape
    A = hs_eot.shape[0]
    P = params["text_proj_w"].shape[1]
    dmid_c = params["cond_w1"].shape[1]
    dmid_l = params["lang_w1"].shape[-1]

    kernel = functools.partial(_cond_path_kernel, num_layers=A)
    return pl.pallas_call(
        kernel,
        out_shape=jax.ShapeDtypeStruct((B, P), jnp.float32),
        grid=(1,),
        in_specs=[
            pl.BlockSpec((B, L), lambda i: (0, 0)),
            pl.BlockSpec((L, P), lambda i: (0, 0)),
            pl.BlockSpec((P, dmid_c), lambda i: (0, 0)),
            pl.BlockSpec((1, dmid_c), lambda i: (0, 0)),
            pl.BlockSpec((dmid_c, P), lambda i: (0, 0)),
            pl.BlockSpec((1, P), lambda i: (0, 0)),
            pl.BlockSpec((A, B, L), lambda i: (0, 0, 0)),
            pl.BlockSpec((A, L, dmid_l), lambda i: (0, 0, 0)),
            pl.BlockSpec((A, 1, dmid_l), lambda i: (0, 0, 0)),
            pl.BlockSpec((A, dmid_l, L), lambda i: (0, 0, 0)),
            pl.BlockSpec((A, 1, L), lambda i: (0, 0, 0)),
        ],
        out_specs=pl.BlockSpec((B, P), lambda i: (0, 0)),
    )(pooler, params["text_proj_w"],
      params["cond_w1"], params["cond_b1"], params["cond_w2"], params["cond_b2"],
      hs_eot,
      params["lang_w1"], params["lang_b1"], params["lang_w2"], params["lang_b2"])


# ----------------------------- model (glue) ---------------------------------

CFG = dict(
    batch=2,
    text_seq=8,
    vision_seq=128,           # num_patches + CLS (synthetic), lane-dense rows
    vision_hidden=128,        # real: 768  (kept lane-dense, small)
    language_hidden=128,      # real: 512  (== projection_dim so `+=` works)
    projection_dim=128,       # real: 512
    adapter_dim=128,          # lane-dense mid dim
    cond_adapter_mid=256,     # hard-coded 256 in the reference __init__
    states_num=13,
    extract_layers=(3, 6, 9),
    vocab=100,
)


def init_params(key, cfg):
    A = len(cfg["extract_layers"])
    L, P, V = cfg["language_hidden"], cfg["projection_dim"], cfg["vision_hidden"]
    dmid, dmid_c, S13 = cfg["adapter_dim"], cfg["cond_adapter_mid"], cfg["states_num"]
    ks = jax.random.split(key, 16)

    def w(kk, shape):
        return 0.05 * jax.random.normal(kk, shape, jnp.float32)

    return dict(
        # frozen CLIP text_projection stand-in (HF CLIP: Linear without bias)
        text_proj_w=w(ks[0], (L, P)),
        # conditional adapter (no fuse in its forward path), mid=256
        cond_w1=w(ks[1], (P, dmid_c)), cond_b1=w(ks[2], (1, dmid_c)),
        cond_w2=w(ks[3], (dmid_c, P)), cond_b2=w(ks[4], (1, P)),
        # language adapters, stacked over extract layers
        lang_w1=w(ks[5], (A, L, dmid)), lang_b1=w(ks[6], (A, 1, dmid)),
        lang_w2=w(ks[7], (A, dmid, L)), lang_b2=w(ks[8], (A, 1, L)),
        # vision adapters (with FusionModule), stacked; matmul weights in bf16
        vision=dict(
            w1=w(ks[9], (A, V, dmid)).astype(jnp.bfloat16),
            b1=w(ks[10], (A, 1, dmid)),
            w2=w(ks[11], (A, dmid, V)).astype(jnp.bfloat16),
            b2=w(ks[12], (A, 1, V)),
            wf=w(ks[13], (A, S13 * V, V)).astype(jnp.bfloat16),
            bf=w(ks[14], (A, 1, V)),
        ),
        # NOTE: conditional_projection(cond) is computed-but-unused in the
        # reference forward -> dropped per perf review (dead code).
    )


def _synthetic_backbone(key, cfg):
    # TODO(synk): frozen pretrained CLIPSeg text/vision transformers are not
    # translatable without the checkpoint; replaced by deterministic synthetic
    # hidden states with matching shapes.  Vision stream emitted directly in
    # bf16 so the kernel wrapper does not need an extra HBM conversion pass.
    kt, kv, kp = jax.random.split(key, 3)
    text_hidden = jax.random.normal(
        kt, (cfg["states_num"], cfg["batch"], cfg["text_seq"], cfg["language_hidden"]),
        jnp.float32)
    pooler = jax.random.normal(kp, (cfg["batch"], cfg["language_hidden"]), jnp.float32)
    vision_hidden = jax.random.normal(
        kv, (cfg["states_num"], cfg["batch"], cfg["vision_seq"], cfg["vision_hidden"]),
        jnp.float32).astype(jnp.bfloat16)
    return text_hidden, pooler, vision_hidden


@jax.jit
def adapted_clipseg_forward(params, input_ids, pixel_values, attention_mask,
                            gt_masks, text_hidden, pooler, vision_hidden):
    cfg = CFG
    del pixel_values, attention_mask, gt_masks   # consumed only by stubbed backbone

    # ---- extract_conditional_embeddings (fully fused in one kernel) ----
    B = pooler.shape[0]
    eot_idx = jnp.argmax(input_ids.astype(jnp.int32), axis=-1)       # glue: gather
    hs_eot = jnp.stack(
        [text_hidden[l + 1][jnp.arange(B), eot_idx] for l in cfg["extract_layers"]],
        axis=0)                                                      # [A, B, L]
    cond = pallas_cond_path(pooler, hs_eot, params)                  # [B, P]

    # ---- extract_vision_activations (3 adapters + fusion, one kernel) ----
    vision_out = pallas_vision_adapters(vision_hidden, cfg["extract_layers"],
                                        params["vision"])            # [A, B, S, V]

    # TODO(synk): CLIPSeg decoder (FiLM conditioning + reduce/transposed-conv
    # head) belongs to the frozen pretrained model and is not translated;
    # return the adapted activations it would consume instead of logits.
    return vision_out, cond


# ------------------------------ pure-JAX ref ---------------------------------

def _ref_forward(params, cfg, input_ids, text_hidden, pooler, vision_hidden):
    def adapter(x, w1, b1, w2, b2):
        h = jnp.maximum(jnp.dot(x, w1, preferred_element_type=jnp.float32) + b1, 0.0)
        h = jnp.maximum(jnp.dot(h.astype(w2.dtype), w2,
                                preferred_element_type=jnp.float32) + b2, 0.0)
        return h + x.astype(jnp.float32)

    B = pooler.shape[0]
    eot = jnp.argmax(input_ids.astype(jnp.int32), axis=-1)
    cond = jnp.dot(pooler, params["text_proj_w"], preferred_element_type=jnp.float32)
    cond = adapter(cond, params["cond_w1"], params["cond_b1"],
                   params["cond_w2"], params["cond_b2"])
    for i, l in enumerate(cfg["extract_layers"]):
        hs = text_hidden[l + 1][jnp.arange(B), eot]
        cond = cond + adapter(hs, params["lang_w1"][i], params["lang_b1"][i],
                              params["lang_w2"][i], params["lang_b2"][i])

    vp = params["vision"]
    s13, B_, S, V = vision_hidden.shape
    vh = vision_hidden.reshape(s13, B_ * S, V).astype(jnp.bfloat16)
    hcat = jnp.concatenate([vh[s] for s in range(s13)], axis=-1)
    outs = []
    for i, l in enumerate(cfg["extract_layers"]):
        x = vh[l + 1]
        h = jnp.maximum(jnp.dot(x, vp["w1"][i],
                                preferred_element_type=jnp.float32) + vp["b1"][i], 0.0)
        h = jnp.maximum(jnp.dot(h.astype(jnp.bfloat16), vp["w2"][i],
                                preferred_element_type=jnp.float32) + vp["b2"][i], 0.0)
        fuse = jnp.dot(hcat, vp["wf"][i],
                       preferred_element_type=jnp.float32) + vp["bf"][i]
        outs.append((h + x.astype(jnp.float32) + fuse).reshape(B_, S, V))
    return jnp.stack(outs, axis=0), cond


if __name__ == "__main__":
    cfg = CFG
    key = jax.random.PRNGKey(0)
    k_param, k_backbone, k_in = jax.random.split(key, 3)

    params = init_params(k_param, cfg)
    text_hidden, pooler, vision_hidden = _synthetic_backbone(k_backbone, cfg)

    k1, k2, k3 = jax.random.split(k_in, 3)
    input_ids = jax.random.randint(k1, (cfg["batch"], cfg["text_seq"]), 0,
                                   cfg["vocab"], dtype=jnp.int32)
    attention_mask = jnp.ones((cfg["batch"], cfg["text_seq"]), jnp.int32)
    pixel_values = jax.random.normal(k2, (cfg["batch"], 3, 16, 16), jnp.float32)  # NCHW
    gt_masks = (jax.random.uniform(k3, (cfg["batch"], 16, 16)) > 0.5).astype(jnp.float32)

    vision_out, cond_out = adapted_clipseg_forward(
        params, input_ids, pixel_values, attention_mask, gt_masks,
        text_hidden, pooler, vision_hidden)
    jax.block_until_ready((vision_out, cond_out))

    assert vision_out.shape == (len(cfg["extract_layers"]), cfg["batch"],
                                cfg["vision_seq"], cfg["vision_hidden"])
    assert cond_out.shape == (cfg["batch"], cfg["projection_dim"])

    ref_vision, ref_cond = _ref_forward(params, cfg, input_ids, text_hidden,
                                        pooler, vision_hidden)
    assert bool(jnp.allclose(cond_out, ref_cond, atol=5e-2, rtol=5e-2))
    assert bool(jnp.allclose(vision_out, ref_vision, atol=5e-2, rtol=5e-2))

    print("KERNEL_OK")
</pallas_src>

<mosaic_0001>
module attributes {stable_mosaic.version = 11 : i64} {
  func.func @_cond_path_kernel(%arg0: i32, %arg1: memref<2x128xf32, #tpu.memory_space<vmem>>, %arg2: memref<128x128xf32, #tpu.memory_space<vmem>>, %arg3: memref<128x256xf32, #tpu.memory_space<vmem>>, %arg4: memref<1x256xf32, #tpu.memory_space<vmem>>, %arg5: memref<256x128xf32, #tpu.memory_space<vmem>>, %arg6: memref<1x128xf32, #tpu.memory_space<vmem>>, %arg7: memref<3x2x128xf32, #tpu.memory_space<vmem>>, %arg8: memref<3x128x128xf32, #tpu.memory_space<vmem>>, %arg9: memref<3x1x128xf32, #tpu.memory_space<vmem>>, %arg10: memref<3x128x128xf32, #tpu.memory_space<vmem>>, %arg11: memref<3x1x128xf32, #tpu.memory_space<vmem>>, %arg12: memref<2x128xf32, #tpu.memory_space<vmem>>) attributes {dimension_semantics = [#tpu.dimension_semantics<arbitrary>], iteration_bounds = array<i64: 1>, scalar_prefetch = 0 : i64, scratch_operands = 0 : i64, tpu.core_type = #tpu.core_type<tc>, window_params = [{pipeline_mode = #tpu.pipeline_mode<synchronous>, transform_indices = @transform_0, window_bounds = array<i64: 2, 128>}, {pipeline_mode = #tpu.pipeline_mode<synchronous>, transform_indices = @transform_1, window_bounds = array<i64: 128, 128>}, {pipeline_mode = #tpu.pipeline_mode<synchronous>, transform_indices = @transform_2, window_bounds = array<i64: 128, 256>}, {pipeline_mode = #tpu.pipeline_mode<synchronous>, transform_indices = @transform_3, window_bounds = array<i64: 1, 256>}, {pipeline_mode = #tpu.pipeline_mode<synchronous>, transform_indices = @transform_4, window_bounds = array<i64: 256, 128>}, {pipeline_mode = #tpu.pipeline_mode<synchronous>, transform_indices = @transform_5, window_bounds = array<i64: 1, 128>}, {pipeline_mode = #tpu.pipeline_mode<synchronous>, transform_indices = @transform_6, window_bounds = array<i64: 3, 2, 128>}, {pipeline_mode = #tpu.pipeline_mode<synchronous>, transform_indices = @transform_7, window_bounds = array<i64: 3, 128, 128>}, {pipeline_mode = #tpu.pipeline_mode<synchronous>, transform_indices = @transform_8, window_bounds = array<i64: 3, 1, 128>}, {pipeline_mode = #tpu.pipeline_mode<synchronous>, transform_indices = @transform_9, window_bounds = array<i64: 3, 128, 128>}, {pipeline_mode = #tpu.pipeline_mode<synchronous>, transform_indices = @transform_10, window_bounds = array<i64: 3, 1, 128>}, {pipeline_mode = #tpu.pipeline_mode<synchronous>, transform_indices = @transform_11, window_bounds = array<i64: 2, 128>}]} {
    %c0 = arith.constant 0 : index
    %c0_0 = arith.constant 0 : index
    %0 = vector.load %arg1[%c0, %c0_0] : memref<2x128xf32, #tpu.memory_space<vmem>>, vector<2x128xf32>
    %c0_1 = arith.constant 0 : index
    %c0_2 = arith.constant 0 : index
    %1 = vector.load %arg2[%c0_1, %c0_2] : memref<128x128xf32, #tpu.memory_space<vmem>>, vector<128x128xf32>
    %cst = arith.constant dense<0.000000e+00> : vector<2x128xf32>
    %2 = tpu.matmul %0, %1, %cst {dimension_numbers = #tpu.dot_dimension_numbers<[1], [0], [0], [1], [0, 0, 1, 1], [], []>} : vector<2x128xf32>, vector<128x128xf32>, vector<2x128xf32> -> vector<2x128xf32>
    %c0_3 = arith.constant 0 : index
    %c0_4 = arith.constant 0 : index
    %3 = vector.load %arg3[%c0_3, %c0_4] : memref<128x256xf32, #tpu.memory_space<vmem>>, vector<128x256xf32>
    %c0_5 = arith.constant 0 : index
    %c0_6 = arith.constant 0 : index
    %4 = vector.load %arg4[%c0_5, %c0_6] : memref<1x256xf32, #tpu.memory_space<vmem>>, vector<1x256xf32>
    %c0_7 = arith.constant 0 : index
    %c0_8 = arith.constant 0 : index
    %5 = vector.load %arg5[%c0_7, %c0_8] : memref<256x128xf32, #tpu.memory_space<vmem>>, vector<256x128xf32>
    %c0_9 = arith.constant 0 : index
    %c0_10 = arith.constant 0 : index
    %6 = vector.load %arg6[%c0_9, %c0_10] : memref<1x128xf32, #tpu.memory_space<vmem>>, vector<1x128xf32>
    %cst_11 = arith.constant dense<0.000000e+00> : vector<2x256xf32>
    %7 = tpu.matmul %2, %3, %cst_11 {dimension_numbers = #tpu.dot_dimension_numbers<[1], [0], [0], [1], [0, 0, 1, 1], [], []>} : vector<2x128xf32>, vector<128x256xf32>, vector<2x256xf32> -> vector<2x256xf32>
    %8 = vector.broadcast %4 : vector<1x256xf32> to vector<2x256xf32>
    %9 = arith.addf %7, %8 : vector<2x256xf32>
    %cst_12 = arith.constant 0.000000e+00 : f32
    %10 = vector.broadcast %cst_12 : f32 to vector<2x256xf32>
    %11 = arith.maximumf %9, %10 : vector<2x256xf32>
    %cst_13 = arith.constant dense<0.000000e+00> : vector<2x128xf32>
    %12 = tpu.matmul %11, %5, %cst_13 {dimension_numbers = #tpu.dot_dimension_numbers<[1], [0], [0], [1], [0, 0, 1, 1], [], []>} : vector<2x256xf32>, vector<256x128xf32>, vector<2x128xf32> -> vector<2x128xf32>
    %13 = vector.broadcast %6 : vector<1x128xf32> to vector<2x128xf32>
    %14 = arith.addf %12, %13 : vector<2x128xf32>
    %cst_14 = arith.constant 0.000000e+00 : f32
    %15 = vector.broadcast %cst_14 : f32 to vector<2x128xf32>
    %16 = arith.maximumf %14, %15 : vector<2x128xf32>
    %17 = arith.addf %16, %2 : vector<2x128xf32>
    %c0_15 = arith.constant 0 : index
    %c0_16 = arith.constant 0 : index
    %c0_17 = arith.constant 0 : index
    %18 = vector.load %arg7[%c0_15, %c0_16, %c0_17] : memref<3x2x128xf32, #tpu.memory_space<vmem>>, vector<1x2x128xf32>
    %19 = vector.shape_cast %18 : vector<1x2x128xf32> to vector<2x128xf32>
    %c0_18 = arith.constant 0 : index
    %c0_19 = arith.constant 0 : index
    %c0_20 = arith.constant 0 : index
    %20 = vector.load %arg8[%c0_18, %c0_19, %c0_20] : memref<3x128x128xf32, #tpu.memory_space<vmem>>, vector<1x128x128xf32>
    %21 = vector.shape_cast %20 : vector<1x128x128xf32> to vector<128x128xf32>
    %c0_21 = arith.constant 0 : index
    %c0_22 = arith.constant 0 : index
    %c0_23 = arith.constant 0 : index
    %22 = vector.load %arg9[%c0_21, %c0_22, %c0_23] : memref<3x1x128xf32, #tpu.memory_space<vmem>>, vector<1x1x128xf32>
    %23 = vector.shape_cast %22 : vector<1x1x128xf32> to vector<1x128xf32>
    %c0_24 = arith.constant 0 : index
    %c0_25 = arith.constant 0 : index
    %c0_26 = arith.constant 0 : index
    %24 = vector.load %arg10[%c0_24, %c0_25, %c0_26] : memref<3x128x128xf32, #tpu.memory_space<vmem>>, vector<1x128x128xf32>
    %25 = vector.shape_cast %24 : vector<1x128x128xf32> to vector<128x128xf32>
    %c0_27 = arith.constant 0 : index
    %c0_28 = arith.constant 0 : index
    %c0_29 = arith.constant 0 : index
    %26 = vector.load %arg11[%c0_27, %c0_28, %c0_29] : memref<3x1x128xf32, #tpu.memory_space<vmem>>, vector<1x1x128xf32>
    %27 = vector.shape_cast %26 : vector<1x1x128xf32> to vector<1x128xf32>
    %cst_30 = arith.constant dense<0.000000e+00> : vector<2x128xf32>
    %28 = tpu.matmul %19, %21, %cst_30 {dimension_numbers = #tpu.dot_dimension_numbers<[1], [0], [0], [1], [0, 0, 1, 1], [], []>} : vector<2x128xf32>, vector<128x128xf32>, vector<2x128xf32> -> vector<2x128xf32>
    %29 = vector.broadcast %23 : vector<1x128xf32> to vector<2x128xf32>
    %30 = arith.addf %28, %29 : vector<2x128xf32>
    %cst_31 = arith.constant 0.000000e+00 : f32
    %31 = vector.broadcast %cst_31 : f32 to vector<2x128xf32>
    %32 = arith.maximumf %30, %31 : vector<2x128xf32>
    %cst_32 = arith.constant dense<0.000000e+00> : vector<2x128xf32>
    %33 = tpu.matmul %32, %25, %cst_32 {dimension_numbers = #tpu.dot_dimension_numbers<[1], [0], [0], [1], [0, 0, 1, 1], [], []>} : vector<2x128xf32>, vector<128x128xf32>, vector<2x128xf32> -> vector<2x128xf32>
    %34 = vector.broadcast %27 : vector<1x128xf32> to vector<2x128xf32>
    %35 = arith.addf %33, %34 : vector<2x128xf32>
    %cst_33 = arith.constant 0.000000e+00 : f32
    %36 = vector.broadcast %cst_33 : f32 to vector<2x128xf32>
    %37 = arith.maximumf %35, %36 : vector<2x128xf32>
    %38 = arith.addf %37, %19 : vector<2x128xf32>
    %39 = arith.addf %17, %38 : vector<2x128xf32>
    %c1 = arith.constant 1 : index
    %c0_34 = arith.constant 0 : index
    %c0_35 = arith.constant 0 : index
    %40 = vector.load %arg7[%c1, %c0_34, %c0_35] : memref<3x2x128xf32, #tpu.memory_space<vmem>>, vector<1x2x128xf32>
    %41 = vector.shape_cast %40 : vector<1x2x128xf32> to vector<2x128xf32>
    %c1_36 = arith.constant 1 : index
    %c0_37 = arith.constant 0 : index
    %c0_38 = arith.constant 0 : index
    %42 = vector.load %arg8[%c1_36, %c0_37, %c0_38] : memref<3x128x128xf32, #tpu.memory_space<vmem>>, vector<1x128x128xf32>
    %43 = vector.shape_cast %42 : vector<1x128x128xf32> to vector<128x128xf32>
    %c1_39 = arith.constant 1 : index
    %c0_40 = arith.constant 0 : index
    %c0_41 = arith.constant 0 : index
    %44 = vector.load %arg9[%c1_39, %c0_40, %c0_41] : memref<3x1x128xf32, #tpu.memory_space<vmem>>, vector<1x1x128xf32>
    %45 = vector.shape_cast %44 : vector<1x1x128xf32> to vector<1x128xf32>
    %c1_42 = arith.constant 1 : index
    %c0_43 = arith.constant 0 : index
    %c0_44 = arith.constant 0 : index
    %46 = vector.load %arg10[%c1_42, %c0_43, %c0_44] : memref<3x128x128xf32, #tpu.memory_space<vmem>>, vector<1x128x128xf32>
    %47 = vector.shape_cast %46 : vector<1x128x128xf32> to vector<128x128xf32>
    %c1_45 = arith.constant 1 : index
    %c0_46 = arith.constant 0 : index
    %c0_47 = arith.constant 0 : index
    %48 = vector.load %arg11[%c1_45, %c0_46, %c0_47] : memref<3x1x128xf32, #tpu.memory_space<vmem>>, vector<1x1x128xf32>
    %49 = vector.shape_cast %48 : vector<1x1x128xf32> to vector<1x128xf32>
    %cst_48 = arith.constant dense<0.000000e+00> : vector<2x128xf32>
    %50 = tpu.matmul %41, %43, %cst_48 {dimension_numbers = #tpu.dot_dimension_numbers<[1], [0], [0], [1], [0, 0, 1, 1], [], []>} : vector<2x128xf32>, vector<128x128xf32>, vector<2x128xf32> -> vector<2x128xf32>
    %51 = vector.broadcast %45 : vector<1x128xf32> to vector<2x128xf32>
    %52 = arith.addf %50, %51 : vector<2x128xf32>
    %cst_49 = arith.constant 0.000000e+00 : f32
    %53 = vector.broadcast %cst_49 : f32 to vector<2x128xf32>
    %54 = arith.maximumf %52, %53 : vector<2x128xf32>
    %cst_50 = arith.constant dense<0.000000e+00> : vector<2x128xf32>
    %55 = tpu.matmul %54, %47, %cst_50 {dimension_numbers = #tpu.dot_dimension_numbers<[1], [0], [0], [1], [0, 0, 1, 1], [], []>} : vector<2x128xf32>, vector<128x128xf32>, vector<2x128xf32> -> vector<2x128xf32>
    %56 = vector.broadcast %49 : vector<1x128xf32> to vector<2x128xf32>
    %57 = arith.addf %55, %56 : vector<2x128xf32>
    %cst_51 = arith.constant 0.000000e+00 : f32
    %58 = vector.broadcast %cst_51 : f32 to vector<2x128xf32>
    %59 = arith.maximumf %57, %58 : vector<2x128xf32>
    %60 = arith.addf %59, %41 : vector<2x128xf32>
    %61 = arith.addf %39, %60 : vector<2x128xf32>
    %c2 = arith.constant 2 : index
    %c0_52 = arith.constant 0 : index
    %c0_53 = arith.constant 0 : index
    %62 = vector.load %arg7[%c2, %c0_52, %c0_53] : memref<3x2x128xf32, #tpu.memory_space<vmem>>, vector<1x2x128xf32>
    %63 = vector.shape_cast %62 : vector<1x2x128xf32> to vector<2x128xf32>
    %c2_54 = arith.constant 2 : index
    %c0_55 = arith.constant 0 : index
    %c0_56 = arith.constant 0 : index
    %64 = vector.load %arg8[%c2_54, %c0_55, %c0_56] : memref<3x128x128xf32, #tpu.memory_space<vmem>>, vector<1x128x128xf32>
    %65 = vector.shape_cast %64 : vector<1x128x128xf32> to vector<128x128xf32>
    %c2_57 = arith.constant 2 : index
    %c0_58 = arith.constant 0 : index
    %c0_59 = arith.constant 0 : index
    %66 = vector.load %arg9[%c2_57, %c0_58, %c0_59] : memref<3x1x128xf32, #tpu.memory_space<vmem>>, vector<1x1x128xf32>
    %67 = vector.shape_cast %66 : vector<1x1x128xf32> to vector<1x128xf32>
    %c2_60 = arith.constant 2 : index
    %c0_61 = arith.constant 0 : index
    %c0_62 = arith.constant 0 : index
    %68 = vector.load %arg10[%c2_60, %c0_61, %c0_62] : memref<3x128x128xf32, #tpu.memory_space<vmem>>, vector<1x128x128xf32>
    %69 = vector.shape_cast %68 : vector<1x128x128xf32> to vector<128x128xf32>
    %c2_63 = arith.constant 2 : index
    %c0_64 = arith.constant 0 : index
    %c0_65 = arith.constant 0 : index
    %70 = vector.load %arg11[%c2_63, %c0_64, %c0_65] : memref<3x1x128xf32, #tpu.memory_space<vmem>>, vector<1x1x128xf32>
    %71 = vector.shape_cast %70 : vector<1x1x128xf32> to vector<1x128xf32>
    %cst_66 = arith.constant dense<0.000000e+00> : vector<2x128xf32>
    %72 = tpu.matmul %63, %65, %cst_66 {dimension_numbers = #tpu.dot_dimension_numbers<[1], [0], [0], [1], [0, 0, 1, 1], [], []>} : vector<2x128xf32>, vector<128x128xf32>, vector<2x128xf32> -> vector<2x128xf32>
    %73 = vector.broadcast %67 : vector<1x128xf32> to vector<2x128xf32>
    %74 = arith.addf %72, %73 : vector<2x128xf32>
    %cst_67 = arith.constant 0.000000e+00 : f32
    %75 = vector.broadcast %cst_67 : f32 to vector<2x128xf32>
    %76 = arith.maximumf %74, %75 : vector<2x128xf32>
    %cst_68 = arith.constant dense<0.000000e+00> : vector<2x128xf32>
    %77 = tpu.matmul %76, %69, %cst_68 {dimension_numbers = #tpu.dot_dimension_numbers<[1], [0], [0], [1], [0, 0, 1, 1], [], []>} : vector<2x128xf32>, vector<128x128xf32>, vector<2x128xf32> -> vector<2x128xf32>
    %78 = vector.broadcast %71 : vector<1x128xf32> to vector<2x128xf32>
    %79 = arith.addf %77, %78 : vector<2x128xf32>
    %cst_69 = arith.constant 0.000000e+00 : f32
    %80 = vector.broadcast %cst_69 : f32 to vector<2x128xf32>
    %81 = arith.maximumf %79, %80 : vector<2x128xf32>
    %82 = arith.addf %81, %63 : vector<2x128xf32>
    %83 = arith.addf %61, %82 : vector<2x128xf32>
    %c0_70 = arith.constant 0 : index
    %c0_71 = arith.constant 0 : index
    %84 = vector.load %arg12[%c0_70, %c0_71] : memref<2x128xf32, #tpu.memory_space<vmem>>, vector<2x128xf32>
    tpu.vector_store %arg12[%c0_70, %c0_71], %83 {strides = array<i32>} : memref<2x128xf32, #tpu.memory_space<vmem>>, vector<2x128xf32>,
    return
  }
  func.func @transform_0(%arg0: i32) -> (i32, i32) {
    %c0_i32 = arith.constant 0 : i32
    %c0_i32_0 = arith.constant 0 : i32
    %c0_i32_1 = arith.constant 0 : i32
    return %c0_i32, %c0_i32_0 : i32, i32
  }
  func.func @transform_1(%arg0: i32) -> (i32, i32) {
    %c0_i32 = arith.constant 0 : i32
    %c0_i32_0 = arith.constant 0 : i32
    %c0_i32_1 = arith.constant 0 : i32
    return %c0_i32, %c0_i32_0 : i32, i32
  }
  func.func @transform_2(%arg0: i32) -> (i32, i32) {
    %c0_i32 = arith.constant 0 : i32
    %c0_i32_0 = arith.constant 0 : i32
    %c0_i32_1 = arith.constant 0 : i32
    return %c0_i32, %c0_i32_0 : i32, i32
  }
  func.func @transform_3(%arg0: i32) -> (i32, i32) {
    %c0_i32 = arith.constant 0 : i32
    %c0_i32_0 = arith.constant 0 : i32
    %c0_i32_1 = arith.constant 0 : i32
    return %c0_i32, %c0_i32_0 : i32, i32
  }
  func.func @transform_4(%arg0: i32) -> (i32, i32) {
    %c0_i32 = arith.constant 0 : i32
    %c0_i32_0 = arith.constant 0 : i32
    %c0_i32_1 = arith.constant 0 : i32
    return %c0_i32, %c0_i32_0 : i32, i32
  }
  func.func @transform_5(%arg0: i32) -> (i32, i32) {
    %c0_i32 = arith.constant 0 : i32
    %c0_i32_0 = arith.constant 0 : i32
    %c0_i32_1 = arith.constant 0 : i32
    return %c0_i32, %c0_i32_0 : i32, i32
  }
  func.func @transform_6(%arg0: i32) -> (i32, i32, i32) {
    %c0_i32 = arith.constant 0 : i32
    %c0_i32_0 = arith.constant 0 : i32
    %c0_i32_1 = arith.constant 0 : i32
    %c0_i32_2 = arith.constant 0 : i32
    return %c0_i32, %c0_i32_0, %c0_i32_1 : i32, i32, i32
  }
  func.func @transform_7(%arg0: i32) -> (i32, i32, i32) {
    %c0_i32 = arith.constant 0 : i32
    %c0_i32_0 = arith.constant 0 : i32
    %c0_i32_1 = arith.constant 0 : i32
    %c0_i32_2 = arith.constant 0 : i32
    return %c0_i32, %c0_i32_0, %c0_i32_1 : i32, i32, i32
  }
  func.func @transform_8(%arg0: i32) -> (i32, i32, i32) {
    %c0_i32 = arith.constant 0 : i32
    %c0_i32_0 = arith.constant 0 : i32
    %c0_i32_1 = arith.constant 0 : i32
    %c0_i32_2 = arith.constant 0 : i32
    return %c0_i32, %c0_i32_0, %c0_i32_1 : i32, i32, i32
  }
  func.func @transform_9(%arg0: i32) -> (i32, i32, i32) {
    %c0_i32 = arith.constant 0 : i32
    %c0_i32_0 = arith.constant 0 : i32
    %c0_i32_1 = arith.constant 0 : i32
    %c0_i32_2 = arith.constant 0 : i32
    return %c0_i32, %c0_i32_0, %c0_i32_1 : i32, i32, i32
  }
  func.func @transform_10(%arg0: i32) -> (i32, i32, i32) {
    %c0_i32 = arith.constant 0 : i32
    %c0_i32_0 = arith.constant 0 : i32
    %c0_i32_1 = arith.constant 0 : i32
    %c0_i32_2 = arith.constant 0 : i32
    return %c0_i32, %c0_i32_0, %c0_i32_1 : i32, i32, i32
  }
  func.func @transform_11(%arg0: i32) -> (i32, i32) {
    %c0_i32 = arith.constant 0 : i32
    %c0_i32_0 = arith.constant 0 : i32
    %c0_i32_1 = arith.constant 0 : i32
    return %c0_i32, %c0_i32_0 : i32, i32
  }
}

module attributes {stable_mosaic.version = 11 : i64} {
  func.func @_vision_adapter_fuse_kernel(%arg0: i32, %arg1: i32, %arg2: i32, %arg3: memref<3xi32, #tpu.memory_space<smem>>, %arg4: memref<1x128x128xbf16, #tpu.memory_space<vmem>>, %arg5: memref<1x128x128xbf16, #tpu.memory_space<vmem>>, %arg6: memref<1x1x128xf32, #tpu.memory_space<vmem>>, %arg7: memref<1x128x128xbf16, #tpu.memory_space<vmem>>, %arg8: memref<1x1x128xf32, #tpu.memory_space<vmem>>, %arg9: memref<1x128x128xbf16, #tpu.memory_space<vmem>>, %arg10: memref<1x1x128xf32, #tpu.memory_space<vmem>>, %arg11: memref<1x128x128xf32, #tpu.memory_space<vmem>>, %arg12: memref<128x128xf32, #tpu.memory_space<vmem>>, %arg13: memref<128x128xbf16, #tpu.memory_space<vmem>>) attributes {dimension_semantics = [#tpu.dimension_semantics<parallel>, #tpu.dimension_semantics<parallel>, #tpu.dimension_semantics<arbitrary>], iteration_bounds = array<i64: 3, 2, 13>, scalar_prefetch = 1 : i64, scratch_operands = 2 : i64, tpu.core_type = #tpu.core_type<tc>, window_params = [{transform_indices = @transform_0, window_bounds = array<i64: 1, 128, 128>}, {transform_indices = @transform_1, window_bounds = array<i64: 1, 128, 128>}, {transform_indices = @transform_2, window_bounds = array<i64: 1, 1, 128>}, {transform_indices = @transform_3, window_bounds = array<i64: 1, 128, 128>}, {transform_indices = @transform_4, window_bounds = array<i64: 1, 1, 128>}, {transform_indices = @transform_5, window_bounds = array<i64: 1, 128, 128>}, {transform_indices = @transform_6, window_bounds = array<i64: 1, 1, 128>}, {transform_indices = @transform_7, window_bounds = array<i64: 1, 128, 128>}]} {
    %c0_i32 = arith.constant 0 : i32
    %0 = arith.cmpi eq, %arg2, %c0_i32 : i32
    %1 = arith.extui %0 : i1 to i32
    %c0_i32_0 = arith.constant 0 : i32
    %2 = arith.cmpi ne, %1, %c0_i32_0 : i32
    scf.if %2 {
      %cst_12 = arith.constant 0.000000e+00 : f32
      %19 = vector.broadcast %cst_12 : f32 to vector<128x128xf32>
      %c0_13 = arith.constant 0 : index
      %c0_14 = arith.constant 0 : index
      %20 = vector.load %arg12[%c0_13, %c0_14] : memref<128x128xf32, #tpu.memory_space<vmem>>, vector<128x128xf32>
      tpu.vector_store %arg12[%c0_13, %c0_14], %19 {strides = array<i32>} : memref<128x128xf32, #tpu.memory_space<vmem>>, vector<128x128xf32>,
    } else {
    }
    %3 = arith.index_cast %arg0 : i32 to index
    %4 = memref.load %arg3[%3] : memref<3xi32, #tpu.memory_space<smem>>
    %5 = arith.cmpi eq, %arg2, %4 : i32
    %6 = arith.extui %5 : i1 to i32
    %c0_i32_1 = arith.constant 0 : i32
    %7 = arith.cmpi ne, %6, %c0_i32_1 : i32
    scf.if %7 {
      %c0_12 = arith.constant 0 : index
      %c0_13 = arith.constant 0 : index
      %c0_14 = arith.constant 0 : index
      %19 = vector.load %arg4[%c0_12, %c0_13, %c0_14] : memref<1x128x128xbf16, #tpu.memory_space<vmem>>, vector<1x128x128xbf16>
      %20 = vector.shape_cast %19 : vector<1x128x128xbf16> to vector<128x128xbf16>
      %c0_15 = arith.constant 0 : index
      %c0_16 = arith.constant 0 : index
      %21 = vector.load %arg13[%c0_15, %c0_16] : memref<128x128xbf16, #tpu.memory_space<vmem>>, vector<128x128xbf16>
      tpu.vector_store %arg13[%c0_15, %c0_16], %20 {strides = array<i32>} : memref<128x128xbf16, #tpu.memory_space<vmem>>, vector<128x128xbf16>,
    } else {
    }
    %c0 = arith.constant 0 : index
    %c0_2 = arith.constant 0 : index
    %8 = vector.load %arg12[%c0, %c0_2] : memref<128x128xf32, #tpu.memory_space<vmem>>, vector<128x128xf32>
    %c0_3 = arith.constant 0 : index
    %c0_4 = arith.constant 0 : index
    %c0_5 = arith.constant 0 : index
    %9 = vector.load %arg4[%c0_3, %c0_4, %c0_5] : memref<1x128x128xbf16, #tpu.memory_space<vmem>>, vector<1x128x128xbf16>
    %10 = vector.shape_cast %9 : vector<1x128x128xbf16> to vector<128x128xbf16>
    %c0_6 = arith.constant 0 : index
    %c0_7 = arith.constant 0 : index
    %c0_8 = arith.constant 0 : index
    %11 = vector.load %arg9[%c0_6, %c0_7, %c0_8] : memref<1x128x128xbf16, #tpu.memory_space<vmem>>, vector<1x128x128xbf16>
    %12 = vector.shape_cast %11 : vector<1x128x128xbf16> to vector<128x128xbf16>
    %cst = arith.constant dense<0.000000e+00> : vector<128x128xf32>
    %13 = tpu.matmul %10, %12, %cst {dimension_numbers = #tpu.dot_dimension_numbers<[1], [0], [0], [1], [0, 0, 1, 1], [], []>} : vector<128x128xbf16>, vector<128x128xbf16>, vector<128x128xf32> -> vector<128x128xf32>
    %14 = arith.addf %8, %13 : vector<128x128xf32>
    %c0_9 = arith.constant 0 : index
    %c0_10 = arith.constant 0 : index
    %15 = vector.load %arg12[%c0_9, %c0_10] : memref<128x128xf32, #tpu.memory_space<vmem>>, vector<128x128xf32>
    tpu.vector_store %arg12[%c0_9, %c0_10], %14 {strides = array<i32>} : memref<128x128xf32, #tpu.memory_space<vmem>>, vector<128x128xf32>,
    %c12_i32 = arith.constant 12 : i32
    %16 = arith.cmpi eq, %arg2, %c12_i32 : i32
    %17 = arith.extui %16 : i1 to i32
    %c0_i32_11 = arith.constant 0 : i32
    %18 = arith.cmpi ne, %17, %c0_i32_11 : i32
    scf.if %18 {
      %c0_12 = arith.constant 0 : index
      %c0_13 = arith.constant 0 : index
      %19 = vector.load %arg13[%c0_12, %c0_13] : memref<128x128xbf16, #tpu.memory_space<vmem>>, vector<128x128xbf16>
      %c0_14 = arith.constant 0 : index
      %c0_15 = arith.constant 0 : index
      %c0_16 = arith.constant 0 : index
      %20 = vector.load %arg5[%c0_14, %c0_15, %c0_16] : memref<1x128x128xbf16, #tpu.memory_space<vmem>>, vector<1x128x128xbf16>
      %21 = vector.shape_cast %20 : vector<1x128x128xbf16> to vector<128x128xbf16>
      %cst_17 = arith.constant dense<0.000000e+00> : vector<128x128xf32>
      %22 = tpu.matmul %19, %21, %cst_17 {dimension_numbers = #tpu.dot_dimension_numbers<[1], [0], [0], [1], [0, 0, 1, 1], [], []>} : vector<128x128xbf16>, vector<128x128xbf16>, vector<128x128xf32> -> vector<128x128xf32>
      %c0_18 = arith.constant 0 : index
      %c0_19 = arith.constant 0 : index
      %c0_20 = arith.constant 0 : index
      %23 = vector.load %arg6[%c0_18, %c0_19, %c0_20] : memref<1x1x128xf32, #tpu.memory_space<vmem>>, vector<1x1x128xf32>
      %24 = vector.shape_cast %23 : vector<1x1x128xf32> to vector<1x128xf32>
      %25 = vector.broadcast %24 : vector<1x128xf32> to vector<128x128xf32>
      %26 = arith.addf %22, %25 : vector<128x128xf32>
      %cst_21 = arith.constant 0.000000e+00 : f32
      %27 = vector.broadcast %cst_21 : f32 to vector<128x128xf32>
      %28 = arith.maximumf %26, %27 : vector<128x128xf32>
      %29 = arith.truncf %28 : vector<128x128xf32> to vector<128x128xbf16>
      %c0_22 = arith.constant 0 : index
      %c0_23 = arith.constant 0 : index
      %c0_24 = arith.constant 0 : index
      %30 = vector.load %arg7[%c0_22, %c0_23, %c0_24] : memref<1x128x128xbf16, #tpu.memory_space<vmem>>, vector<1x128x128xbf16>
      %31 = vector.shape_cast %30 : vector<1x128x128xbf16> to vector<128x128xbf16>
      %cst_25 = arith.constant dense<0.000000e+00> : vector<128x128xf32>
      %32 = tpu.matmul %29, %31, %cst_25 {dimension_numbers = #tpu.dot_dimension_numbers<[1], [0], [0], [1], [0, 0, 1, 1], [], []>} : vector<128x128xbf16>, vector<128x128xbf16>, vector<128x128xf32> -> vector<128x128xf32>
      %c0_26 = arith.constant 0 : index
      %c0_27 = arith.constant 0 : index
      %c0_28 = arith.constant 0 : index
      %33 = vector.load %arg8[%c0_26, %c0_27, %c0_28] : memref<1x1x128xf32, #tpu.memory_space<vmem>>, vector<1x1x128xf32>
      %34 = vector.shape_cast %33 : vector<1x1x128xf32> to vector<1x128xf32>
      %35 = vector.broadcast %34 : vector<1x128xf32> to vector<128x128xf32>
      %36 = arith.addf %32, %35 : vector<128x128xf32>
      %cst_29 = arith.constant 0.000000e+00 : f32
      %37 = vector.broadcast %cst_29 : f32 to vector<128x128xf32>
      %38 = arith.maximumf %36, %37 : vector<128x128xf32>
      %39 = arith.extf %19 : vector<128x128xbf16> to vector<128x128xf32>
      %40 = arith.addf %38, %39 : vector<128x128xf32>
      %c0_30 = arith.constant 0 : index
      %c0_31 = arith.constant 0 : index
      %41 = vector.load %arg12[%c0_30, %c0_31] : memref<128x128xf32, #tpu.memory_space<vmem>>, vector<128x128xf32>
      %42 = arith.addf %40, %41 : vector<128x128xf32>
      %c0_32 = arith.constant 0 : index
      %c0_33 = arith.constant 0 : index
      %c0_34 = arith.constant 0 : index
      %43 = vector.load %arg10[%c0_32, %c0_33, %c0_34] : memref<1x1x128xf32, #tpu.memory_space<vmem>>, vector<1x1x128xf32>
      %44 = vector.shape_cast %43 : vector<1x1x128xf32> to vector<1x128xf32>
      %45 = vector.broadcast %44 : vector<1x128xf32> to vector<128x128xf32>
      %46 = arith.addf %42, %45 : vector<128x128xf32>
      %c0_35 = arith.constant 0 : index
      %c0_36 = arith.constant 0 : index
      %c0_37 = arith.constant 0 : index
      %47 = vector.load %arg11[%c0_35, %c0_36, %c0_37] : memref<1x128x128xf32, #tpu.memory_space<vmem>>, vector<1x128x128xf32>
      %48 = vector.shape_cast %47 : vector<1x128x128xf32> to vector<128x128xf32>
      %49 = vector.shape_cast %46 : vector<128x128xf32> to vector<1x128x128xf32>
      tpu.vector_store %arg11[%c0_35, %c0_36, %c0_37], %49 {strides = array<i32>} : memref<1x128x128xf32, #tpu.memory_space<vmem>>, vector<1x128x128xf32>,
    } else {
    }
    return
  }
  func.func @transform_0(%arg0: i32, %arg1: i32, %arg2: i32, %arg3: memref<3xi32, #tpu.memory_space<smem>>) -> (i32, i32, i32) {
    %c0_i32 = arith.constant 0 : i32
    %c0_i32_0 = arith.constant 0 : i32
    return %arg2, %arg1, %c0_i32 : i32, i32, i32
  }
  func.func @transform_1(%arg0: i32, %arg1: i32, %arg2: i32, %arg3: memref<3xi32, #tpu.memory_space<smem>>) -> (i32, i32, i32) {
    %c0_i32 = arith.constant 0 : i32
    %c0_i32_0 = arith.constant 0 : i32
    %c0_i32_1 = arith.constant 0 : i32
    return %arg0, %c0_i32, %c0_i32_0 : i32, i32, i32
  }
  func.func @transform_2(%arg0: i32, %arg1: i32, %arg2: i32, %arg3: memref<3xi32, #tpu.memory_space<smem>>) -> (i32, i32, i32) {
    %c0_i32 = arith.constant 0 : i32
    %c0_i32_0 = arith.constant 0 : i32
    %c0_i32_1 = arith.constant 0 : i32
    return %arg0, %c0_i32, %c0_i32_0 : i32, i32, i32
  }
  func.func @transform_3(%arg0: i32, %arg1: i32, %arg2: i32, %arg3: memref<3xi32, #tpu.memory_space<smem>>) -> (i32, i32, i32) {
    %c0_i32 = arith.constant 0 : i32
    %c0_i32_0 = arith.constant 0 : i32
    %c0_i32_1 = arith.constant 0 : i32
    return %arg0, %c0_i32, %c0_i32_0 : i32, i32, i32
  }
  func.func @transform_4(%arg0: i32, %arg1: i32, %arg2: i32, %arg3: memref<3xi32, #tpu.memory_space<smem>>) -> (i32, i32, i32) {
    %c0_i32 = arith.constant 0 : i32
    %c0_i32_0 = arith.constant 0 : i32
    %c0_i32_1 = arith.constant 0 : i32
    return %arg0, %c0_i32, %c0_i32_0 : i32, i32, i32
  }
  func.func @transform_5(%arg0: i32, %arg1: i32, %arg2: i32, %arg3: memref<3xi32, #tpu.memory_space<smem>>) -> (i32, i32, i32) {
    %c0_i32 = arith.constant 0 : i32
    %c0_i32_0 = arith.constant 0 : i32
    return %arg0, %arg2, %c0_i32 : i32, i32, i32
  }
  func.func @transform_6(%arg0: i32, %arg1: i32, %arg2: i32, %arg3: memref<3xi32, #tpu.memory_space<smem>>) -> (i32, i32, i32) {
    %c0_i32 = arith.constant 0 : i32
    %c0_i32_0 = arith.constant 0 : i32
    %c0_i32_1 = arith.constant 0 : i32
    return %arg0, %c0_i32, %c0_i32_0 : i32, i32, i32
  }
  func.func @transform_7(%arg0: i32, %arg1: i32, %arg2: i32, %arg3: memref<3xi32, #tpu.memory_space<smem>>) -> (i32, i32, i32) {
    %c0_i32 = arith.constant 0 : i32
    %c0_i32_0 = arith.constant 0 : i32
    return %arg0, %arg1, %c0_i32 : i32, i32, i32
  }
}

</mosaic_0001>

<llo_original>
// kernel: adapted_clipseg_forward.2
$region0: #{adapted_clipseg_forward.2}
  #allocation0 [shape = 'u32[]', space=smem, size = 0x4, offset = 0x4, fixed_abs, tag = 'smem constant byte address 0x4 - core index']
  #allocation1 [shape = 'u32[72,128]{1,0:T(1,128)}', space=vmem, size = 0x9000, scoped, tag = 'internal scratch']
  %s0 = inlined_call_operand.hbm [shape: f32[2,128], index: 0, kind: input, shape index: {}]
  %s1 = inlined_call_operand.hbm [shape: f32[128,128], index: 1, kind: input, shape index: {}]
  %s2 = inlined_call_operand.hbm [shape: f32[128,256], index: 2, kind: input, shape index: {}]
  %s3 = inlined_call_operand.hbm [shape: f32[1,256], index: 3, kind: input, shape index: {}]
  %s4 = inlined_call_operand.hbm [shape: f32[256,128], index: 4, kind: input, shape index: {}]
  %s5 = inlined_call_operand.hbm [shape: f32[1,128], index: 5, kind: input, shape index: {}]
  %s6 = inlined_call_operand.vmem [shape: f32[3,2,128], index: 6, kind: input, shape index: {}]
  %s7 = inlined_call_operand.hbm [shape: f32[3,128,128], index: 7, kind: input, shape index: {}]
  %s8 = inlined_call_operand.hbm [shape: f32[3,1,128], index: 8, kind: input, shape index: {}]
  %s9 = inlined_call_operand.hbm [shape: f32[3,128,128], index: 9, kind: input, shape index: {}]
  %s10 = inlined_call_operand.hbm [shape: f32[3,1,128], index: 10, kind: input, shape index: {}]
  %s11 = inlined_call_operand.hbm [shape: f32[2,128], index: 11, kind: output, shape index: {}]
  %s12 = sld [smem:[#allocation0]]
  $region94: #{adapted_clipseg_forward.2} parent=0
    _
  %s14 = ssub.s32 1, %s12
  %s15 = scalar_select 0, %s14, %s12
  $region1: #{adapted_clipseg_forward.2} parent=0
    #allocation2 [shape = 'u8[1024]{0}', space=vmem, size = 0x400, scoped, tag = 'input window, operand 0, single buffered']
    #allocation3 [shape = 's32[1]{0}', space=sflag, size = 0x4, scoped, tag = 'scoped memory for adapted_clipseg_forward.2']
    #allocation4 [shape = 's32[1]{0}', space=sflag, size = 0x4, scoped, tag = 'scoped memory for adapted_clipseg_forward.2']
    #allocation5 [shape = 'u8[65536]{0}', space=vmem, size = 0x10000, scoped, tag = 'input window, operand 1, single buffered']
    #allocation6 [shape = 's32[1]{0}', space=sflag, size = 0x4, scoped, tag = 'scoped memory for adapted_clipseg_forward.2']
    #allocation7 [shape = 'u8[131072]{0}', space=vmem, size = 0x20000, scoped, tag = 'input window, operand 2, single buffered']
    #allocation8 [shape = 'u8[1024]{0}', space=vmem, size = 0x400, scoped, tag = 'input window, operand 3, single buffered']
    #allocation9 [shape = 's32[1]{0}', space=sflag, size = 0x4, scoped, tag = 'scoped memory for adapted_clipseg_forward.2']
    #allocation10 [shape = 'u8[131072]{0}', space=vmem, size = 0x20000, scoped, tag = 'input window, operand 4, single buffered']
    #allocation11 [shape = 'u8[512]{0}', space=vmem, size = 0x400, scoped, tag = 'input window, operand 5, single buffered']
    #allocation12 [shape = 's32[1]{0}', space=sflag, size = 0x4, scoped, tag = 'scoped memory for adapted_clipseg_forward.2']
    #allocation13 [shape = 'u8[196608]{0}', space=vmem, size = 0x30000, scoped, tag = 'input window, operand 7, single buffered']
    #allocation14 [shape = 'u8[1536]{0}', space=vmem, size = 0x800, scoped, tag = 'input window, operand 8, single buffered']
    #allocation15 [shape = 's32[1]{0}', space=sflag, size = 0x4, scoped, tag = 'scoped memory for adapted_clipseg_forward.2']
    #allocation16 [shape = 'u8[196608]{0}', space=vmem, size = 0x30000, scoped, tag = 'input window, operand 9, single buffered']
    #allocation17 [shape = 'u8[1536]{0}', space=vmem, size = 0x800, scoped, tag = 'input window, operand 10, single buffered']
    #allocation18 [shape = 's32[1]{0}', space=sflag, size = 0x4, scoped, tag = 'scoped memory for adapted_clipseg_forward.2']
    #allocation19 [shape = 'u8[1024]{0}', space=vmem, size = 0x400, scoped, tag = 'output window, operand 0, single buffered']
    %16 = vsyncpa [#allocation3], 0
    %17 = vsyncpa [#allocation6], 0
    %18 = vsyncpa [#allocation9], 0
    %19 = vsyncpa [#allocation12], 0
    %20 = vsyncpa [#allocation15], 0
    %21 = vsyncpa [#allocation18], 0
    %22 = vsyncpa [#allocation4], 0
    // Predicated region
    $region2: #{adapted_clipseg_forward.2} parent=1 // pred_check
      _
    $region3: #{adapted_clipseg_forward.2} parent=1 // pred_check_branch
      %24 = sbr.rel (0) target = $region5
    $region4: #{adapted_clipseg_forward.2} parent=1 // pred_region
      %26 = vsyncadd [#allocation3], 0
      %s28 = sshll.u32 %s0, 4
      %s29 = int_to_ptr.hbm [resolvable:$true] %s28
      %s30 = sshll.u32 [#allocation2], 4
      %s31 = int_to_ptr.vmem [resolvable:$true] %s30
      %33 = dma.hbm_to_vmem [thread:$0]  %s29, 32, %s31, [#allocation3]
    $region5: #{adapted_clipseg_forward.2} parent=1 // pred_fallthru
      _
    // Predicated region
    $region6: #{adapted_clipseg_forward.2} parent=1 // pred_check
      _
    $region7: #{adapted_clipseg_forward.2} parent=1 // pred_check_branch
      %35 = sbr.rel (0) target = $region9
    $region8: #{adapted_clipseg_forward.2} parent=1 // pred_region
      %37 = vsyncadd [#allocation6], 0
      %s38 = sshll.u32 %s1, 4
      %s39 = int_to_ptr.hbm [resolvable:$true] %s38
      %s40 = sshll.u32 [#allocation5], 4
      %s41 = int_to_ptr.vmem [resolvable:$true] %s40
      %46 = dma.hbm_to_vmem [thread:$0]  %s39, 2048, %s41, [#allocation6], 128, 128, 8
    $region9: #{adapted_clipseg_forward.2} parent=1 // pred_fallthru
      _
    // Predicated region
    $region10: #{adapted_clipseg_forward.2} parent=1 // pred_check
      _
    $region11: #{adapted_clipseg_forward.2} parent=1 // pred_check_branch
      %48 = sbr.rel (0) target = $region13
    $region12: #{adapted_clipseg_forward.2} parent=1 // pred_region
      %50 = vsyncadd [#allocation6], 0
      %s51 = sshll.u32 %s2, 4
      %s52 = int_to_ptr.hbm [resolvable:$true] %s51
      %s53 = sshll.u32 [#allocation7], 4
      %s54 = int_to_ptr.vmem [resolvable:$true] %s53
      %59 = dma.hbm_to_vmem [thread:$0]  %s52, 4096, %s54, [#allocation6], 256, 256, 16
    $region13: #{adapted_clipseg_forward.2} parent=1 // pred_fallthru
      _
    // Predicated region
    $region14: #{adapted_clipseg_forward.2} parent=1 // pred_check
      _
    $region15: #{adapted_clipseg_forward.2} parent=1 // pred_check_branch
      %61 = sbr.rel (0) target = $region17
    $region16: #{adapted_clipseg_forward.2} parent=1 // pred_region
      %63 = vsyncadd [#allocation9], 0
      %s65 = sshll.u32 %s3, 4
      %s66 = int_to_ptr.hbm [resolvable:$true] %s65
      %s67 = sshll.u32 [#allocation8], 4
      %s68 = int_to_ptr.vmem [resolvable:$true] %s67
      %70 = dma.hbm_to_vmem [thread:$0]  %s66, 32, %s68, [#allocation9]
    $region17: #{adapted_clipseg_forward.2} parent=1 // pred_fallthru
      _
    // Predicated region
    $region18: #{adapted_clipseg_forward.2} parent=1 // pred_check
      _
    $region19: #{adapted_clipseg_forward.2} parent=1 // pred_check_branch
      %72 = sbr.rel (0) target = $region21
    $region20: #{adapted_clipseg_forward.2} parent=1 // pred_region
      %74 = vsyncadd [#allocation9], 0
      %s75 = sshll.u32 %s4, 4
      %s76 = int_to_ptr.hbm [resolvable:$true] %s75
      %s77 = sshll.u32 [#allocation10], 4
      %s78 = int_to_ptr.vmem [resolvable:$true] %s77
      %83 = dma.hbm_to_vmem [thread:$0]  %s76, 4096, %s78, [#allocation9], 128, 128, 8
    $region21: #{adapted_clipseg_forward.2} parent=1 // pred_fallthru
      _
    // Predicated region
    $region22: #{adapted_clipseg_forward.2} parent=1 // pred_check
      _
    $region23: #{adapted_clipseg_forward.2} parent=1 // pred_check_branch
      %85 = sbr.rel (0) target = $region25
    $region24: #{adapted_clipseg_forward.2} parent=1 // pred_region
      %87 = vsyncadd [#allocation12], 0
      %s89 = sshll.u32 %s5, 4
      %s90 = int_to_ptr.hbm [resolvable:$true] %s89
      %s91 = sshll.u32 [#allocation11], 4
      %s92 = int_to_ptr.vmem [resolvable:$true] %s91
      %94 = dma.hbm_to_vmem [thread:$0]  %s90, 16, %s92, [#allocation12]
    $region25: #{adapted_clipseg_forward.2} parent=1 // pred_fallthru
      _
    // Predicated region
    $region26: #{adapted_clipseg_forward.2} parent=1 // pred_check
      _
    $region27: #{adapted_clipseg_forward.2} parent=1 // pred_check_branch
      %96 = sbr.rel (0) target = $region29
    $region28: #{adapted_clipseg_forward.2} parent=1 // pred_region
      _
    $region29: #{adapted_clipseg_forward.2} parent=1 // pred_fallthru
      _
    // Predicated region
    $region30: #{adapted_clipseg_forward.2} parent=1 // pred_check
      _
    $region31: #{adapted_clipseg_forward.2} parent=1 // pred_check_branch
      %98 = sbr.rel (0) target = $region33
    $region32: #{adapted_clipseg_forward.2} parent=1 // pred_region
      %100 = vsyncadd [#allocation12], 0
      %s101 = sshll.u32 %s7, 4
      %s102 = int_to_ptr.hbm [resolvable:$true] %s101
      %s103 = sshll.u32 [#allocation13], 4
      %s104 = int_to_ptr.vmem [resolvable:$true] %s103
      %109 = dma.hbm_to_vmem [thread:$0]  %s102, 6144, %s104, [#allocation12], 128, 128, 8
    $region33: #{adapted_clipseg_forward.2} parent=1 // pred_fallthru
      _
    // Predicated region
    $region34: #{adapted_clipseg_forward.2} parent=1 // pred_check
      _
    $region35: #{adapted_clipseg_forward.2} parent=1 // pred_check_branch
      %111 = sbr.rel (0) target = $region37
    $region36: #{adapted_clipseg_forward.2} parent=1 // pred_region
      %113 = vsyncadd [#allocation15], 0
      %s114 = sshll.u32 %s8, 4
      %s115 = int_to_ptr.hbm [resolvable:$true] %s114
      %s116 = sshll.u32 [#allocation14], 4
      %s117 = int_to_ptr.vmem [resolvable:$true] %s116
      %122 = dma.hbm_to_vmem [thread:$0]  %s115, 48, %s117, [#allocation15], 16, 16, 1
    $region37: #{adapted_clipseg_forward.2} parent=1 // pred_fallthru
      _
    // Predicated region
    $region38: #{adapted_clipseg_forward.2} parent=1 // pred_check
      _
    $region39: #{adapted_clipseg_forward.2} parent=1 // pred_check_branch
      %124 = sbr.rel (0) target = $region41
    $region40: #{adapted_clipseg_forward.2} parent=1 // pred_region
      %126 = vsyncadd [#allocation15], 0
      %s127 = sshll.u32 %s9, 4
      %s128 = int_to_ptr.hbm [resolvable:$true] %s127
      %s129 = sshll.u32 [#allocation16], 4
      %s130 = int_to_ptr.vmem [resolvable:$true] %s129
      %135 = dma.hbm_to_vmem [thread:$0]  %s128, 6144, %s130, [#allocation15], 128, 128, 8
    $region41: #{adapted_clipseg_forward.2} parent=1 // pred_fallthru
      _
    // Predicated region
    $region42: #{adapted_clipseg_forward.2} parent=1 // pred_check
      _
    $region43: #{adapted_clipseg_forward.2} parent=1 // pred_check_branch
      %137 = sbr.rel (0) target = $region45
    $region44: #{adapted_clipseg_forward.2} parent=1 // pred_region
      %139 = vsyncadd [#allocation18], 0
      %s140 = sshll.u32 %s10, 4
      %s141 = int_to_ptr.hbm [resolvable:$true] %s140
      %s142 = sshll.u32 [#allocation17], 4
      %s143 = int_to_ptr.vmem [resolvable:$true] %s142
      %148 = dma.hbm_to_vmem [thread:$0]  %s141, 48, %s143, [#allocation18], 16, 16, 1
    $region45: #{adapted_clipseg_forward.2} parent=1 // pred_fallthru
      _
    // Predicated region
    $region46: #{adapted_clipseg_forward.2} parent=1 // pred_check
      _
    $region47: #{adapted_clipseg_forward.2} parent=1 // pred_check_branch
      %150 = sbr.rel (0) target = $region49
    $region48: #{adapted_clipseg_forward.2} parent=1 // pred_region
      %152 = dma.done [#allocation3], 32
    $region49: #{adapted_clipseg_forward.2} parent=1 // pred_fallthru
      _
    // Predicated region
    $region50: #{adapted_clipseg_forward.2} parent=1 // pred_check
      _
    $region51: #{adapted_clipseg_forward.2} parent=1 // pred_check_branch
      %154 = sbr.rel (0) target = $region53
    $region52: #{adapted_clipseg_forward.2} parent=1 // pred_region
      %156 = dma.done [#allocation6], 2048
    $region53: #{adapted_clipseg_forward.2} parent=1 // pred_fallthru
      _
    // Predicated region
    $region54: #{adapted_clipseg_forward.2} parent=1 // pred_check
      _
    $region55: #{adapted_clipseg_forward.2} parent=1 // pred_check_branch
      %158 = sbr.rel (0) target = $region57
    $region56: #{adapted_clipseg_forward.2} parent=1 // pred_region
      %160 = dma.done [#allocation6], 4096
    $region57: #{adapted_clipseg_forward.2} parent=1 // pred_fallthru
      _
    // Predicated region
    $region58: #{adapted_clipseg_forward.2} parent=1 // pred_check
      _
    $region59: #{adapted_clipseg_forward.2} parent=1 // pred_check_branch
      %162 = sbr.rel (0) target = $region61
    $region60: #{adapted_clipseg_forward.2} parent=1 // pred_region
      %164 = dma.done [#allocation9], 32
    $region61: #{adapted_clipseg_forward.2} parent=1 // pred_fallthru
      _
    // Predicated region
    $region62: #{adapted_clipseg_forward.2} parent=1 // pred_check
      _
    $region63: #{adapted_clipseg_forward.2} parent=1 // pred_check_branch
      %166 = sbr.rel (0) target = $region65
    $region64: #{adapted_clipseg_forward.2} parent=1 // pred_region
      %168 = dma.done [#allocation9], 4096
    $region65: #{adapted_clipseg_forward.2} parent=1 // pred_fallthru
      _
    // Predicated region
    $region66: #{adapted_clipseg_forward.2} parent=1 // pred_check
      _
    $region67: #{adapted_clipseg_forward.2} parent=1 // pred_check_branch
      %170 = sbr.rel (0) target = $region69
    $region68: #{adapted_clipseg_forward.2} parent=1 // pred_region
      %172 = dma.done [#allocation12], 16
    $region69: #{adapted_clipseg_forward.2} parent=1 // pred_fallthru
      _
    // Predicated region
    $region70: #{adapted_clipseg_forward.2} parent=1 // pred_check
      _
    $region71: #{adapted_clipseg_forward.2} parent=1 // pred_check_branch
      %174 = sbr.rel (0) target = $region73
    $region72: #{adapted_clipseg_forward.2} parent=1 // pred_region
      %176 = dma.done [#allocation12], 6144
    $region73: #{adapted_clipseg_forward.2} parent=1 // pred_fallthru
      _
    // Predicated region
    $region74: #{adapted_clipseg_forward.2} parent=1 // pred_check
      _
    $region75: #{adapted_clipseg_forward.2} parent=1 // pred_check_branch
      %178 = sbr.rel (0) target = $region77
    $region76: #{adapted_clipseg_forward.2} parent=1 // pred_region
      %180 = dma.done [#allocation15], 48
    $region77: #{adapted_clipseg_forward.2} parent=1 // pred_fallthru
      _
    // Predicated region
    $region78: #{adapted_clipseg_forward.2} parent=1 // pred_check
      _
    $region79: #{adapted_clipseg_forward.2} parent=1 // pred_check_branch
      %182 = sbr.rel (0) target = $region81
    $region80: #{adapted_clipseg_forward.2} parent=1 // pred_region
      %184 = dma.done [#allocation15], 6144
    $region81: #{adapted_clipseg_forward.2} parent=1 // pred_fallthru
      _
    // Predicated region
    $region82: #{adapted_clipseg_forward.2} parent=1 // pred_check
      _
    $region83: #{adapted_clipseg_forward.2} parent=1 // pred_check_branch
      %186 = sbr.rel (0) target = $region85
    $region84: #{adapted_clipseg_forward.2} parent=1 // pred_region
      %188 = dma.done [#allocation18], 48
    $region85: #{adapted_clipseg_forward.2} parent=1 // pred_fallthru
      _
    %v189 = vld [vmem:[#allocation2] sm:$0x3]
    %v190 = vld [vmem:[#allocation5] sm:$0xff]
    %v191 = vld [vmem:[#allocation5 + $0x8] sm:$0xff]
    %v192 = vld [vmem:[#allocation5 + $0x10] sm:$0xff]
    %v193 = vld [vmem:[#allocation5 + $0x18] sm:$0xff]
    %v194 = vld [vmem:[#allocation5 + $0x20] sm:$0xff]
    %v195 = vld [vmem:[#allocation5 + $0x28] sm:$0xff]
    %v196 = vld [vmem:[#allocation5 + $0x30] sm:$0xff]
    %v197 = vld [vmem:[#allocation5 + $0x38] sm:$0xff]
    %v198 = vld [vmem:[#allocation5 + $0x40] sm:$0xff]
    %v199 = vld [vmem:[#allocation5 + $0x48] sm:$0xff]
    %v200 = vld [vmem:[#allocation5 + $0x50] sm:$0xff]
    %v201 = vld [vmem:[#allocation5 + $0x58] sm:$0xff]
    %v202 = vld [vmem:[#allocation5 + $0x60] sm:$0xff]
    %v203 = vld [vmem:[#allocation5 + $0x68] sm:$0xff]
    %v204 = vld [vmem:[#allocation5 + $0x70] sm:$0xff]
    %v205 = vld [vmem:[#allocation5 + $0x78] sm:$0xff]
    %206 = vmatpush.msra.mxu0 %v205
    %207 = vmatpush.msra.mxu0 %v204
    %208 = vmatpush.msra.mxu0 %v203
    %209 = vmatpush.msra.mxu0 %v202
    %210 = vmatpush.msra.mxu0 %v201
    %211 = vmatpush.msra.mxu0 %v200
    %212 = vmatpush.msra.mxu0 %v199
    %213 = vmatpush.msra.mxu0 %v198
    %214 = vmatpush.msra.mxu0 %v197
    %215 = vmatpush.msra.mxu0 %v196
    %216 = vmatpush.msra.mxu0 %v195
    %217 = vmatpush.msra.mxu0 %v194
    %218 = vmatpush.msra.mxu0 %v193
    %219 = vmatpush.msra.mxu0 %v192
    %220 = vmatpush.msra.mxu0 %v191
    %221 = vmatpush.msra.mxu0 %v190
    %222 = vmatmul.f32.gmra.mxu0 %v189
    %v223 = vpop.f32.mrf.mxu0
    %v224 = vadd.f32 0.0, %v223
    %225 = vdwg.mxu0
    %v226 = vld [vmem:[#allocation7] sm:$0xff]
    %v227 = vld [vmem:[#allocation7 + $0x8] sm:$0xff]
    %v228 = vld [vmem:[#allocation7 + $0x10] sm:$0xff]
    %v229 = vld [vmem:[#allocation7 + $0x18] sm:$0xff]
    %v230 = vld [vmem:[#allocation7 + $0x20] sm:$0xff]
    %v231 = vld [vmem:[#allocation7 + $0x28] sm:$0xff]
    %v232 = vld [vmem:[#allocation7 + $0x30] sm:$0xff]
    %v233 = vld [vmem:[#allocation7 + $0x38] sm:$0xff]
    %v234 = vld [vmem:[#allocation7 + $0x40] sm:$0xff]
    %v235 = vld [vmem:[#allocation7 + $0x48] sm:$0xff]
    %v236 = vld [vmem:[#allocation7 + $0x50] sm:$0xff]
    %v237 = vld [vmem:[#allocation7 + $0x58] sm:$0xff]
    %v238 = vld [vmem:[#allocation7 + $0x60] sm:$0xff]
    %v239 = vld [vmem:[#allocation7 + $0x68] sm:$0xff]
    %v240 = vld [vmem:[#allocation7 + $0x70] sm:$0xff]
    %v241 = vld [vmem:[#allocation7 + $0x78] sm:$0xff]
    %v242 = vld [vmem:[#allocation7 + $0x80] sm:$0xff]
    %v243 = vld [vmem:[#allocation7 + $0x88] sm:$0xff]
    %v244 = vld [vmem:[#allocation7 + $0x90] sm:$0xff]
    %v245 = vld [vmem:[#allocation7 + $0x98] sm:$0xff]
    %v246 = vld [vmem:[#allocation7 + $0xa0] sm:$0xff]
    %v247 = vld [vmem:[#allocation7 + $0xa8] sm:$0xff]
    %v248 = vld [vmem:[#allocation7 + $0xb0] sm:$0xff]
    %v249 = vld [vmem:[#allocation7 + $0xb8] sm:$0xff]
    %v250 = vld [vmem:[#allocation7 + $0xc0] sm:$0xff]
    %v251 = vld [vmem:[#allocation7 + $0xc8] sm:$0xff]
    %v252 = vld [vmem:[#allocation7 + $0xd0] sm:$0xff]
    %v253 = vld [vmem:[#allocation7 + $0xd8] sm:$0xff]
    %v254 = vld [vmem:[#allocation7 + $0xe0] sm:$0xff]
    %v255 = vld [vmem:[#allocation7 + $0xe8] sm:$0xff]
    %v256 = vld [vmem:[#allocation7 + $0xf0] sm:$0xff]
    %v257 = vld [vmem:[#allocation7 + $0xf8] sm:$0xff]
    %v258 = vld [vmem:[#allocation8] sm:$0x3]
    %v259 = vld [vmem:[#allocation10] sm:$0xff]
    %v260 = vld [vmem:[#allocation10 + $0x8] sm:$0xff]
    %v261 = vld [vmem:[#allocation10 + $0x10] sm:$0xff]
    %v262 = vld [vmem:[#allocation10 + $0x18] sm:$0xff]
    %v263 = vld [vmem:[#allocation10 + $0x20] sm:$0xff]
    %v264 = vld [vmem:[#allocation10 + $0x28] sm:$0xff]
    %v265 = vld [vmem:[#allocation10 + $0x30] sm:$0xff]
    %v266 = vld [vmem:[#allocation10 + $0x38] sm:$0xff]
    %v267 = vld [vmem:[#allocation10 + $0x40] sm:$0xff]
    %v268 = vld [vmem:[#allocation10 + $0x48] sm:$0xff]
    %v269 = vld [vmem:[#allocation10 + $0x50] sm:$0xff]
    %v270 = vld [vmem:[#allocation10 + $0x58] sm:$0xff]
    %v271 = vld [vmem:[#allocation10 + $0x60] sm:$0xff]
    %v272 = vld [vmem:[#allocation10 + $0x68] sm:$0xff]
    %v273 = vld [vmem:[#allocation10 + $0x70] sm:$0xff]
    %v274 = vld [vmem:[#allocation10 + $0x78] sm:$0xff]
    %v275 = vld [vmem:[#allocation10 + $0x80] sm:$0xff]
    %v276 = vld [vmem:[#allocation10 + $0x88] sm:$0xff]
    %v277 = vld [vmem:[#allocation10 + $0x90] sm:$0xff]
    %v278 = vld [vmem:[#allocation10 + $0x98] sm:$0xff]
    %v279 = vld [vmem:[#allocation10 + $0xa0] sm:$0xff]
    %v280 = vld [vmem:[#allocation10 + $0xa8] sm:$0xff]
    %v281 = vld [vmem:[#allocation10 + $0xb0] sm:$0xff]
    %v282 = vld [vmem:[#allocation10 + $0xb8] sm:$0xff]
    %v283 = vld [vmem:[#allocation10 + $0xc0] sm:$0xff]
    %v284 = vld [vmem:[#allocation10 + $0xc8] sm:$0xff]
    %v285 = vld [vmem:[#allocation10 + $0xd0] sm:$0xff]
    %v286 = vld [vmem:[#allocation10 + $0xd8] sm:$0xff]
    %v287 = vld [vmem:[#allocation10 + $0xe0] sm:$0xff]
    %v288 = vld [vmem:[#allocation10 + $0xe8] sm:$0xff]
    %v289 = vld [vmem:[#allocation10 + $0xf0] sm:$0xff]
    %v290 = vld [vmem:[#allocation10 + $0xf8] sm:$0xff]
    %v291 = vld [vmem:[#allocation11] sm:$0x1]
    %v293 = vperm.slane %v258, 0
    %v294 = vperm.slane %v258, 1
    %297 = vmatpush.msra.mxu0 %v256
    %298 = vmatpush.msra.mxu0 %v254
    %299 = vmatpush.msra.mxu0 %v252
    %300 = vmatpush.msra.mxu0 %v250
    %301 = vmatpush.msra.mxu0 %v248
    %302 = vmatpush.msra.mxu0 %v246
    %303 = vmatpush.msra.mxu0 %v244
    %304 = vmatpush.msra.mxu0 %v242
    %305 = vmatpush.msra.mxu0 %v240
    %306 = vmatpush.msra.mxu0 %v238
    %307 = vmatpush.msra.mxu0 %v236
    %308 = vmatpush.msra.mxu0 %v234
    %309 = vmatpush.msra.mxu0 %v232
    %310 = vmatpush.msra.mxu0 %v230
    %311 = vmatpush.msra.mxu0 %v228
    %312 = vmatpush.msra.mxu0 %v226
    %313 = vmatmul.f32.gmra.mxu0 %v224
    %v314 = vpop.f32.mrf.mxu0
    %v315 = vadd.f32 %v293, %v314
    %316 = vdwg.mxu0
    %317 = vmatpush.msra.mxu0 %v257
    %318 = vmatpush.msra.mxu0 %v255
    %319 = vmatpush.msra.mxu0 %v253
    %320 = vmatpush.msra.mxu0 %v251
    %321 = vmatpush.msra.mxu0 %v249
    %322 = vmatpush.msra.mxu0 %v247
    %323 = vmatpush.msra.mxu0 %v245
    %324 = vmatpush.msra.mxu0 %v243
    %325 = vmatpush.msra.mxu0 %v241
    %326 = vmatpush.msra.mxu0 %v239
    %327 = vmatpush.msra.mxu0 %v237
    %328 = vmatpush.msra.mxu0 %v235
    %329 = vmatpush.msra.mxu0 %v233
    %330 = vmatpush.msra.mxu0 %v231
    %331 = vmatpush.msra.mxu0 %v229
    %332 = vmatpush.msra.mxu0 %v227
    %333 = vmatmul.f32.gmra.mxu0 %v224
    %v334 = vpop.f32.mrf.mxu0
    %v335 = vadd.f32 %v294, %v334
    %336 = vdwg.mxu0
    %v337 = vmax.f32 %v315, 0.0
    %v338 = vmax.f32 %v335, 0.0
    %v340 = vperm.slane %v291, 0
    %342 = vmatpush.msra.mxu0 %v274
    %343 = vmatpush.msra.mxu0 %v273
    %344 = vmatpush.msra.mxu0 %v272
    %345 = vmatpush.msra.mxu0 %v271
    %346 = vmatpush.msra.mxu0 %v270
    %347 = vmatpush.msra.mxu0 %v269
    %348 = vmatpush.msra.mxu0 %v268
    %349 = vmatpush.msra.mxu0 %v267
    %350 = vmatpush.msra.mxu0 %v266
    %351 = vmatpush.msra.mxu0 %v265
    %352 = vmatpush.msra.mxu0 %v264
    %353 = vmatpush.msra.mxu0 %v263
    %354 = vmatpush.msra.mxu0 %v262
    %355 = vmatpush.msra.mxu0 %v261
    %356 = vmatpush.msra.mxu0 %v260
    %357 = vmatpush.msra.mxu0 %v259
    %358 = vmatmul.f32.gmra.mxu0 %v337
    %v359 = vpop.f32.mrf.mxu0
    %v360 = vadd.f32 %v340, %v359
    %361 = vdwg.mxu0
    %362 = vmatpush.msra.mxu0 %v290
    %363 = vmatpush.msra.mxu0 %v289
    %364 = vmatpush.msra.mxu0 %v288
    %365 = vmatpush.msra.mxu0 %v287
    %366 = vmatpush.msra.mxu0 %v286
    %367 = vmatpush.msra.mxu0 %v285
    %368 = vmatpush.msra.mxu0 %v284
    %369 = vmatpush.msra.mxu0 %v283
    %370 = vmatpush.msra.mxu0 %v282
    %371 = vmatpush.msra.mxu0 %v281
    %372 = vmatpush.msra.mxu0 %v280
    %373 = vmatpush.msra.mxu0 %v279
    %374 = vmatpush.msra.mxu0 %v278
    %375 = vmatpush.msra.mxu0 %v277
    %376 = vmatpush.msra.mxu0 %v276
    %377 = vmatpush.msra.mxu0 %v275
    %378 = vmatmul.f32.gmra.mxu0 %v338
    %v379 = vpop.f32.mrf.mxu0
    %v380 = vadd.f32 %v360, %v379
    %381 = vdwg.mxu0
    %v382 = vmax.f32 %v380, 0.0
    %v383 = vadd.f32 %v382, %v224
    %v384 = vld [vmem:[%s6] sm:$0x3]
    %v385 = vld [vmem:[#allocation13] sm:$0xff]
    %v386 = vld [vmem:[#allocation13 + $0x8] sm:$0xff]
    %v387 = vld [vmem:[#allocation13 + $0x10] sm:$0xff]
    %v388 = vld [vmem:[#allocation13 + $0x18] sm:$0xff]
    %v389 = vld [vmem:[#allocation13 + $0x20] sm:$0xff]
    %v390 = vld [vmem:[#allocation13 + $0x28] sm:$0xff]
    %v391 = vld [vmem:[#allocation13 + $0x30] sm:$0xff]
    %v392 = vld [vmem:[#allocation13 + $0x38] sm:$0xff]
    %v393 = vld [vmem:[#allocation13 + $0x40] sm:$0xff]
    %v394 = vld [vmem:[#allocation13 + $0x48] sm:$0xff]
    %v395 = vld [vmem:[#allocation13 + $0x50] sm:$0xff]
    %v396 = vld [vmem:[#allocation13 + $0x58] sm:$0xff]
    %v397 = vld [vmem:[#allocation13 + $0x60] sm:$0xff]
    %v398 = vld [vmem:[#allocation13 + $0x68] sm:$0xff]
    %v399 = vld [vmem:[#allocation13 + $0x70] sm:$0xff]
    %v400 = vld [vmem:[#allocation13 + $0x78] sm:$0xff]
    %v401 = vld [vmem:[#allocation14] sm:$0x1]
    %v402 = vld [vmem:[#allocation16] sm:$0xff]
    %v403 = vld [vmem:[#allocation16 + $0x8] sm:$0xff]
    %v404 = vld [vmem:[#allocation16 + $0x10] sm:$0xff]
    %v405 = vld [vmem:[#allocation16 + $0x18] sm:$0xff]
    %v406 = vld [vmem:[#allocation16 + $0x20] sm:$0xff]
    %v407 = vld [vmem:[#allocation16 + $0x28] sm:$0xff]
    %v408 = vld [vmem:[#allocation16 + $0x30] sm:$0xff]
    %v409 = vld [vmem:[#allocation16 + $0x38] sm:$0xff]
    %v410 = vld [vmem:[#allocation16 + $0x40] sm:$0xff]
    %v411 = vld [vmem:[#allocation16 + $0x48] sm:$0xff]
    %v412 = vld [vmem:[#allocation16 + $0x50] sm:$0xff]
    %v413 = vld [vmem:[#allocation16 + $0x58] sm:$0xff]
    %v414 = vld [vmem:[#allocation16 + $0x60] sm:$0xff]
    %v415 = vld [vmem:[#allocation16 + $0x68] sm:$0xff]
    %v416 = vld [vmem:[#allocation16 + $0x70] sm:$0xff]
    %v417 = vld [vmem:[#allocation16 + $0x78] sm:$0xff]
    %v418 = vld [vmem:[#allocation17] sm:$0x1]
    %v420 = vperm.slane %v401, 0
    %422 = vmatpush.msra.mxu0 %v400
    %423 = vmatpush.msra.mxu0 %v399
    %424 = vmatpush.msra.mxu0 %v398
    %425 = vmatpush.msra.mxu0 %v397
    %426 = vmatpush.msra.mxu0 %v396
    %427 = vmatpush.msra.mxu0 %v395
    %428 = vmatpush.msra.mxu0 %v394
    %429 = vmatpush.msra.mxu0 %v393
    %430 = vmatpush.msra.mxu0 %v392
    %431 = vmatpush.msra.mxu0 %v391
    %432 = vmatpush.msra.mxu0 %v390
    %433 = vmatpush.msra.mxu0 %v389
    %434 = vmatpush.msra.mxu0 %v388
    %435 = vmatpush.msra.mxu0 %v387
    %436 = vmatpush.msra.mxu0 %v386
    %437 = vmatpush.msra.mxu0 %v385
    %438 = vmatmul.f32.gmra.mxu0 %v384
    %v439 = vpop.f32.mrf.mxu0
    %v440 = vadd.f32 %v420, %v439
    %441 = vdwg.mxu0
    %v442 = vmax.f32 %v440, 0.0
    %v444 = vperm.slane %v418, 0
    %446 = vmatpush.msra.mxu0 %v417
    %447 = vmatpush.msra.mxu0 %v416
    %448 = vmatpush.msra.mxu0 %v415
    %449 = vmatpush.msra.mxu0 %v414
    %450 = vmatpush.msra.mxu0 %v413
    %451 = vmatpush.msra.mxu0 %v412
    %452 = vmatpush.msra.mxu0 %v411
    %453 = vmatpush.msra.mxu0 %v410
    %454 = vmatpush.msra.mxu0 %v409
    %455 = vmatpush.msra.mxu0 %v408
    %456 = vmatpush.msra.mxu0 %v407
    %457 = vmatpush.msra.mxu0 %v406
    %458 = vmatpush.msra.mxu0 %v405
    %459 = vmatpush.msra.mxu0 %v404
    %460 = vmatpush.msra.mxu0 %v403
    %461 = vmatpush.msra.mxu0 %v402
    %462 = vmatmul.f32.gmra.mxu0 %v442
    %v463 = vpop.f32.mrf.mxu0
    %v464 = vadd.f32 %v444, %v463
    %465 = vdwg.mxu0
    %v466 = vmax.f32 %v464, 0.0
    %v467 = vadd.f32 %v466, %v384
    %v468 = vadd.f32 %v383, %v467
    %s469 = scalar_lea.vmem %s6, 2
    %v470 = vld [vmem:[%s469] sm:$0x3]
    %s471 = scalar_lea.vmem [#allocation13], 128
    %v472 = vld [vmem:[%s471] sm:$0xff]
    %v473 = vld [vmem:[%s471 + $0x8] sm:$0xff]
    %v474 = vld [vmem:[%s471 + $0x10] sm:$0xff]
    %v475 = vld [vmem:[%s471 + $0x18] sm:$0xff]
    %v476 = vld [vmem:[%s471 + $0x20] sm:$0xff]
    %v477 = vld [vmem:[%s471 + $0x28] sm:$0xff]
    %v478 = vld [vmem:[%s471 + $0x30] sm:$0xff]
    %v479 = vld [vmem:[%s471 + $0x38] sm:$0xff]
    %v480 = vld [vmem:[%s471 + $0x40] sm:$0xff]
    %v481 = vld [vmem:[%s471 + $0x48] sm:$0xff]
    %v482 = vld [vmem:[%s471 + $0x50] sm:$0xff]
    %v483 = vld [vmem:[%s471 + $0x58] sm:$0xff]
    %v484 = vld [vmem:[%s471 + $0x60] sm:$0xff]
    %v485 = vld [vmem:[%s471 + $0x68] sm:$0xff]
    %v486 = vld [vmem:[%s471 + $0x70] sm:$0xff]
    %v487 = vld [vmem:[%s471 + $0x78] sm:$0xff]
    %s488 = scalar_lea.vmem [#allocation14], 1
    %v489 = vld [vmem:[%s488] sm:$0x1]
    %s490 = scalar_lea.vmem [#allocation16], 128
    %v491 = vld [vmem:[%s490] sm:$0xff]
    %v492 = vld [vmem:[%s490 + $0x8] sm:$0xff]
    %v493 = vld [vmem:[%s490 + $0x10] sm:$0xff]
    %v494 = vld [vmem:[%s490 + $0x18] sm:$0xff]
    %v495 = vld [vmem:[%s490 + $0x20] sm:$0xff]
    %v496 = vld [vmem:[%s490 + $0x28] sm:$0xff]
    %v497 = vld [vmem:[%s490 + $0x30] sm:$0xff]
    %v498 = vld [vmem:[%s490 + $0x38] sm:$0xff]
    %v499 = vld [vmem:[%s490 + $0x40] sm:$0xff]
    %v500 = vld [vmem:[%s490 + $0x48] sm:$0xff]
    %v501 = vld [vmem:[%s490 + $0x50] sm:$0xff]
    %v502 = vld [vmem:[%s490 + $0x58] sm:$0xff]
    %v503 = vld [vmem:[%s490 + $0x60] sm:$0xff]
    %v504 = vld [vmem:[%s490 + $0x68] sm:$0xff]
    %v505 = vld [vmem:[%s490 + $0x70] sm:$0xff]
    %v506 = vld [vmem:[%s490 + $0x78] sm:$0xff]
    %s507 = scalar_lea.vmem [#allocation17], 1
    %v508 = vld [vmem:[%s507] sm:$0x1]
    %v510 = vperm.slane %v489, 0
    %512 = vmatpush.msra.mxu0 %v487
    %513 = vmatpush.msra.mxu0 %v486
    %514 = vmatpush.msra.mxu0 %v485
    %515 = vmatpush.msra.mxu0 %v484
    %516 = vmatpush.msra.mxu0 %v483
    %517 = vmatpush.msra.mxu0 %v482
    %518 = vmatpush.msra.mxu0 %v481
    %519 = vmatpush.msra.mxu0 %v480
    %520 = vmatpush.msra.mxu0 %v479
    %521 = vmatpush.msra.mxu0 %v478
    %522 = vmatpush.msra.mxu0 %v477
    %523 = vmatpush.msra.mxu0 %v476
    %524 = vmatpush.msra.mxu0 %v475
    %525 = vmatpush.msra.mxu0 %v474
    %526 = vmatpush.msra.mxu0 %v473
    %527 = vmatpush.msra.mxu0 %v472
    %528 = vmatmul.f32.gmra.mxu0 %v470
    %v529 = vpop.f32.mrf.mxu0
    %v530 = vadd.f32 %v510, %v529
    %531 = vdwg.mxu0
    %v532 = vmax.f32 %v530, 0.0
    %v534 = vperm.slane %v508, 0
    %536 = vmatpush.msra.mxu0 %v506
    %537 = vmatpush.msra.mxu0 %v505
    %538 = vmatpush.msra.mxu0 %v504
    %539 = vmatpush.msra.mxu0 %v503
    %540 = vmatpush.msra.mxu0 %v502
    %541 = vmatpush.msra.mxu0 %v501
    %542 = vmatpush.msra.mxu0 %v500
    %543 = vmatpush.msra.mxu0 %v499
    %544 = vmatpush.msra.mxu0 %v498
    %545 = vmatpush.msra.mxu0 %v497
    %546 = vmatpush.msra.mxu0 %v496
    %547 = vmatpush.msra.mxu0 %v495
    %548 = vmatpush.msra.mxu0 %v494
    %549 = vmatpush.msra.mxu0 %v493
    %550 = vmatpush.msra.mxu0 %v492
    %551 = vmatpush.msra.mxu0 %v491
    %552 = vmatmul.f32.gmra.mxu0 %v532
    %v553 = vpop.f32.mrf.mxu0
    %v554 = vadd.f32 %v534, %v553
    %555 = vdwg.mxu0
    %v556 = vmax.f32 %v554, 0.0
    %v557 = vadd.f32 %v556, %v470
    %v558 = vadd.f32 %v468, %v557
    %s559 = scalar_lea.vmem %s6, 4
    %v560 = vld [vmem:[%s559] sm:$0x3]
    %s561 = scalar_lea.vmem [#allocation13], 256
    %v562 = vld [vmem:[%s561] sm:$0xff]
    %v563 = vld [vmem:[%s561 + $0x8] sm:$0xff]
    %v564 = vld [vmem:[%s561 + $0x10] sm:$0xff]
    %v565 = vld [vmem:[%s561 + $0x18] sm:$0xff]
    %v566 = vld [vmem:[%s561 + $0x20] sm:$0xff]
    %v567 = vld [vmem:[%s561 + $0x28] sm:$0xff]
    %v568 = vld [vmem:[%s561 + $0x30] sm:$0xff]
    %v569 = vld [vmem:[%s561 + $0x38] sm:$0xff]
    %v570 = vld [vmem:[%s561 + $0x40] sm:$0xff]
    %v571 = vld [vmem:[%s561 + $0x48] sm:$0xff]
    %v572 = vld [vmem:[%s561 + $0x50] sm:$0xff]
    %v573 = vld [vmem:[%s561 + $0x58] sm:$0xff]
    %v574 = vld [vmem:[%s561 + $0x60] sm:$0xff]
    %v575 = vld [vmem:[%s561 + $0x68] sm:$0xff]
    %v576 = vld [vmem:[%s561 + $0x70] sm:$0xff]
    %v577 = vld [vmem:[%s561 + $0x78] sm:$0xff]
    %s578 = scalar_lea.vmem [#allocation14], 2
    %v579 = vld [vmem:[%s578] sm:$0x1]
    %s580 = scalar_lea.vmem [#allocation16], 256
    %v581 = vld [vmem:[%s580] sm:$0xff]
    %v582 = vld [vmem:[%s580 + $0x8] sm:$0xff]
    %v583 = vld [vmem:[%s580 + $0x10] sm:$0xff]
    %v584 = vld [vmem:[%s580 + $0x18] sm:$0xff]
    %v585 = vld [vmem:[%s580 + $0x20] sm:$0xff]
    %v586 = vld [vmem:[%s580 + $0x28] sm:$0xff]
    %v587 = vld [vmem:[%s580 + $0x30] sm:$0xff]
    %v588 = vld [vmem:[%s580 + $0x38] sm:$0xff]
    %v589 = vld [vmem:[%s580 + $0x40] sm:$0xff]
    %v590 = vld [vmem:[%s580 + $0x48] sm:$0xff]
    %v591 = vld [vmem:[%s580 + $0x50] sm:$0xff]
    %v592 = vld [vmem:[%s580 + $0x58] sm:$0xff]
    %v593 = vld [vmem:[%s580 + $0x60] sm:$0xff]
    %v594 = vld [vmem:[%s580 + $0x68] sm:$0xff]
    %v595 = vld [vmem:[%s580 + $0x70] sm:$0xff]
    %v596 = vld [vmem:[%s580 + $0x78] sm:$0xff]
    %s597 = scalar_lea.vmem [#allocation17], 2
    %v598 = vld [vmem:[%s597] sm:$0x1]
    %v600 = vperm.slane %v579, 0
    %602 = vmatpush.msra.mxu0 %v577
    %603 = vmatpush.msra.mxu0 %v576
    %604 = vmatpush.msra.mxu0 %v575
    %605 = vmatpush.msra.mxu0 %v574
    %606 = vmatpush.msra.mxu0 %v573
    %607 = vmatpush.msra.mxu0 %v572
    %608 = vmatpush.msra.mxu0 %v571
    %609 = vmatpush.msra.mxu0 %v570
    %610 = vmatpush.msra.mxu0 %v569
    %611 = vmatpush.msra.mxu0 %v568
    %612 = vmatpush.msra.mxu0 %v567
    %613 = vmatpush.msra.mxu0 %v566
    %614 = vmatpush.msra.mxu0 %v565
    %615 = vmatpush.msra.mxu0 %v564
    %616 = vmatpush.msra.mxu0 %v563
    %617 = vmatpush.msra.mxu0 %v562
    %618 = vmatmul.f32.gmra.mxu0 %v560
    %v619 = vpop.f32.mrf.mxu0
    %v620 = vadd.f32 %v600, %v619
    %621 = vdwg.mxu0
    %v622 = vmax.f32 %v620, 0.0
    %v624 = vperm.slane %v598, 0
    %626 = vmatpush.msra.mxu0 %v596
    %627 = vmatpush.msra.mxu0 %v595
    %628 = vmatpush.msra.mxu0 %v594
    %629 = vmatpush.msra.mxu0 %v593
    %630 = vmatpush.msra.mxu0 %v592
    %631 = vmatpush.msra.mxu0 %v591
    %632 = vmatpush.msra.mxu0 %v590
    %633 = vmatpush.msra.mxu0 %v589
    %634 = vmatpush.msra.mxu0 %v588
    %635 = vmatpush.msra.mxu0 %v587
    %636 = vmatpush.msra.mxu0 %v586
    %637 = vmatpush.msra.mxu0 %v585
    %638 = vmatpush.msra.mxu0 %v584
    %639 = vmatpush.msra.mxu0 %v583
    %640 = vmatpush.msra.mxu0 %v582
    %641 = vmatpush.msra.mxu0 %v581
    %642 = vmatmul.f32.gmra.mxu0 %v622
    %v643 = vpop.f32.mrf.mxu0
    %v644 = vadd.f32 %v624, %v643
    %645 = vdwg.mxu0
    %v646 = vmax.f32 %v644, 0.0
    %v647 = vadd.f32 %v646, %v560
    %v648 = vadd.f32 %v558, %v647
    %649 = vst [vmem:[#allocation19] sm:$0x3] %v648
    // Predicated region
    $region86: #{adapted_clipseg_forward.2} parent=1 // pred_check
      _
    $region87: #{adapted_clipseg_forward.2} parent=1 // pred_check_branch
      %651 = sbr.rel (0) target = $region89
    $region88: #{adapted_clipseg_forward.2} parent=1 // pred_region
      %653 = vsyncadd [#allocation4], 0
      %s655 = sshll.u32 [#allocation19], 4
      %s656 = int_to_ptr.vmem [resolvable:$true] %s655
      %s657 = sshll.u32 %s11, 4
      %s658 = int_to_ptr.hbm [resolvable:$true] %s657
      %660 = dma.vmem_to_hbm [thread:$0]  %s656, 32, %s658, [#allocation4]
    $region89: #{adapted_clipseg_forward.2} parent=1 // pred_fallthru
      _
    // Predicated region
    $region90: #{adapted_clipseg_forward.2} parent=1 // pred_check
      _
    $region91: #{adapted_clipseg_forward.2} parent=1 // pred_check_branch
      %662 = sbr.rel (0) target = $region93
    $region92: #{adapted_clipseg_forward.2} parent=1 // pred_region
      %664 = dma.done [#allocation4], 32
    $region93: #{adapted_clipseg_forward.2} parent=1 // pred_fallthru
      _
    %665 = vsyncpa [#allocation3], 1
    %666 = vsyncpa [#allocation6], 1
    %667 = vsyncpa [#allocation9], 1
    %668 = vsyncpa [#allocation12], 1
    %669 = vsyncpa [#allocation15], 1
    %670 = vsyncpa [#allocation18], 1
    %671 = vsyncpa [#allocation4], 1

// kernel: adapted_clipseg_forward.3
$region0: #{adapted_clipseg_forward.3}
  #allocation0 [shape = 'u32[]', space=smem, size = 0x4, offset = 0x4, fixed_abs, tag = 'smem constant byte address 0x4 - core index']
  #allocation1 [shape = 'u32[72,128]{1,0:T(1,128)}', space=vmem, size = 0x9000, scoped, tag = 'internal scratch']
  #allocation2 [shape = 'f32[128,128]{1,0:T(8,128)}', space=vmem, size = 0x10000, scoped, tag = 'scratch operand']
  #allocation3 [shape = 'bf16[128,128]{1,0:T(8,128)(2,1)}', space=vmem, size = 0x8000, scoped, tag = 'scratch operand']
  #allocation4 [shape = 's32[1]{0}', space=sflag, size = 0x4, scoped, tag = 'scoped memory for adapted_clipseg_forward.3']
  #allocation5 [shape = 'u8[512]{0}', space=smem, size = 0x200, scoped, tag = 'prefetched SMEM operand 0']
  %s0 = inlined_call_operand.hbm [shape: s32[3], index: 0, kind: input, shape index: {}]
  %s1 = inlined_call_operand.hbm [shape: bf16[13,256,128], index: 1, kind: input, shape index: {}]
  %s2 = inlined_call_operand.hbm [shape: bf16[3,128,128], index: 2, kind: input, shape index: {}]
  %s3 = inlined_call_operand.hbm [shape: f32[3,1,128], index: 3, kind: input, shape index: {}]
  %s4 = inlined_call_operand.hbm [shape: bf16[3,128,128], index: 4, kind: input, shape index: {}]
  %s5 = inlined_call_operand.hbm [shape: f32[3,1,128], index: 5, kind: input, shape index: {}]
  %s6 = inlined_call_operand.hbm [shape: bf16[3,1664,128], index: 6, kind: input, shape index: {}]
  %s7 = inlined_call_operand.hbm [shape: f32[3,1,128], index: 7, kind: input, shape index: {}]
  %s8 = inlined_call_operand.hbm [shape: f32[3,256,128], index: 8, kind: output, shape index: {}]
  %s9 = sld [smem:[#allocation0]]
  $region101: #{adapted_clipseg_forward.3} parent=0
    _
  %s11 = ssub.s32 1, %s9
  %s12 = scalar_select 0, %s11, %s9
  %s14 = sshll.u32 %s0, 4
  %s15 = int_to_ptr.hbm [resolvable:$true] %s14
  %17 = dma.hbm_to_smem %s15, 16, [#allocation5], [#allocation4]
  %19 = dma.done [#allocation4], 16
  %20 = sfence
  $region1: #{adapted_clipseg_forward.3} parent=0
    #allocation6 [shape = 'u8[65536]{0}', space=vmem, size = 0x10000, scoped, tag = 'input window, operand 1']
    #allocation7 [shape = 's32[2]{0}', space=sflag, size = 0x8, scoped, tag = 'scoped memory for adapted_clipseg_forward.3']
    #allocation8 [shape = 's32[2]{0}', space=sflag, size = 0x8, scoped, tag = 'scoped memory for adapted_clipseg_forward.3']
    #allocation9 [shape = 'u8[65536]{0}', space=vmem, size = 0x10000, scoped, tag = 'input window, operand 2']
    #allocation10 [shape = 's32[2]{0}', space=sflag, size = 0x8, scoped, tag = 'scoped memory for adapted_clipseg_forward.3']
    #allocation11 [shape = 'u8[1024]{0}', space=vmem, size = 0x400, scoped, tag = 'input window, operand 3']
    #allocation12 [shape = 'u8[65536]{0}', space=vmem, size = 0x10000, scoped, tag = 'input window, operand 4']
    #allocation13 [shape = 's32[2]{0}', space=sflag, size = 0x8, scoped, tag = 'scoped memory for adapted_clipseg_forward.3']
    #allocation14 [shape = 'u8[1024]{0}', space=vmem, size = 0x400, scoped, tag = 'input window, operand 5']
    #allocation15 [shape = 'u8[65536]{0}', space=vmem, size = 0x10000, scoped, tag = 'input window, operand 6']
    #allocation16 [shape = 's32[2]{0}', space=sflag, size = 0x8, scoped, tag = 'scoped memory for adapted_clipseg_forward.3']
    #allocation17 [shape = 'u8[1024]{0}', space=vmem, size = 0x400, scoped, tag = 'input window, operand 7']
    #allocation18 [shape = 'u8[131072]{0}', space=vmem, size = 0x20000, scoped, tag = 'output window, operand 0']
    %21 = vsyncpa [#allocation7], 0
    %s22 = scalar_lea.sflag [#allocation7], 1
    %23 = vsyncpa %s22, 0
    %24 = vsyncpa [#allocation10], 0
    %s25 = scalar_lea.sflag [#allocation10], 1
    %26 = vsyncpa %s25, 0
    %27 = vsyncpa [#allocation13], 0
    %s28 = scalar_lea.sflag [#allocation13], 1
    %29 = vsyncpa %s28, 0
    %30 = vsyncpa [#allocation16], 0
    %s31 = scalar_lea.sflag [#allocation16], 1
    %32 = vsyncpa %s31, 0
    %33 = vsyncpa [#allocation8], 0
    %s34 = scalar_lea.sflag [#allocation8], 1
    %35 = vsyncpa %s34, 0
    loop: start=0, step=1, limit=80
    $region2: #{adapted_clipseg_forward.3} parent=1 // loop_pre_header
      _
    $region3: #{adapted_clipseg_forward.3} parent=1 // loop_header
      %s37 = sphi 0, %s41
      %p38 = scmp.ge.s32.totalorder %s37, 80
      %s44 = sphi 0, %s63
      %s45 = sphi 0, %s59
      %s46 = sphi 0, %s55
      %s47 = sphi 0, %s44
      %s48 = sphi 0, %s45
      %s49 = sphi 0, %s46
      %s50 = sphi 0, %s47
      %s51 = sphi 0, %s48
      %s52 = sphi 0, %s49
      %s68 = sphi 0, %s70
      %s71 = sphi 0, %s68
      %s72 = sphi 0, %s71
      %s88 = sphi 0, %s72
      %s94 = sphi 0, %s96
      %s97 = sphi 0, %s94
      %s98 = sphi 0, %s97
      %s114 = sphi 0, %s98
      %s120 = sphi 0, %s122
      %s123 = sphi 0, %s120
      %s124 = sphi 0, %s123
      %s140 = sphi 0, %s124
      %s146 = sphi 0, %s148
      %s149 = sphi 0, %s146
      %s150 = sphi 0, %s149
      %s166 = sphi 0, %s150
      %s172 = sphi 0, %s174
      %s175 = sphi 0, %s172
      %s176 = sphi 0, %s175
      %s192 = sphi 0, %s176
      %s200 = sphi 0, %s202
      %s203 = sphi 0, %s200
      %s204 = sphi 0, %s203
      %s220 = sphi 0, %s204
      %s226 = sphi 0, %s228
      %s229 = sphi 0, %s226
      %s230 = sphi 0, %s229
      %s246 = sphi 0, %s230
      %s254 = sphi 0, %s256
      %s257 = sphi 0, %s254
      %s258 = sphi 0, %s257
      %s274 = sphi 0, %s258
    $region4: #{adapted_clipseg_forward.3} parent=1 // loop_header_branch
      %40 = sbr.rel (%p38) target = $region8
    $region5: #{adapted_clipseg_forward.3} parent=1 // loop_body
      %s42 = ssub.s32 %s37, 1
      %s43 = ssub.s32 %s37, 2
      %s53 = sadd.s32 1, %s46
      %p54 = scmp.ge.s32.totalorder %s53, 13
      %s55 = scalar_select %p54, 0, %s53
      %s56 = sadd.s32 1, %s45
      %s57 = scalar_select %p54, %s56, %s45
      %p58 = scmp.ge.s32.totalorder %s57, 2
      %s59 = scalar_select %p58, 0, %s57
      %s60 = sadd.s32 1, %s44
      %s61 = scalar_select %p58, %s60, %s44
      %p62 = scmp.ge.s32.totalorder %s61, 3
      %s63 = scalar_select %p62, 0, %s61
      %s64 = ssub.s32 %s46, %s55
      %s65 = ssub.s32 %s45, %s59
      %s66 = sor.u32 %s64, %s65
      %p67 = scmp.eq.s32.totalorder %s66, 0
      %s69 = sadd.s32 %s68, 1
      %s70 = scalar_select %p67, %s68, %s69
      %p73 = pneg %p67
      %p74 = scmp.eq.s32.totalorder %s37, 77
      %p75 = por %p73, %p74
      %p76 = scmp.ne.s32.totalorder %s68, %s71
      %p77 = scmp.eq.s32.totalorder %s37, 0
      %p78 = por %p76, %p77
      %p79 = scmp.ne.s32.totalorder %s68, %s71
      %p80 = scmp.eq.s32.totalorder %s42, 77
      %p81 = por %p79, %p80
      %p82 = scmp.ne.s32.totalorder %s71, %s72
      %p83 = scmp.eq.s32.totalorder %s42, 0
      %p84 = por %p82, %p83
      %p85 = scmp.ne.s32.totalorder %s71, %s72
      %p86 = scmp.eq.s32.totalorder %s43, 77
      %p87 = por %p85, %p86
      %p89 = scmp.ne.s32.totalorder %s72, %s88
      %p90 = scmp.eq.s32.totalorder %s43, 0
      %p91 = por %p89, %p90
      %s92 = ssub.s32 %s44, %s63
      %p93 = scmp.eq.s32.totalorder %s92, 0
      %s95 = sadd.s32 %s94, 1
      %s96 = scalar_select %p93, %s94, %s95
      %p99 = pneg %p93
      %p100 = scmp.eq.s32.totalorder %s37, 77
      %p101 = por %p99, %p100
      %p102 = scmp.ne.s32.totalorder %s94, %s97
      %p103 = scmp.eq.s32.totalorder %s37, 0
      %p104 = por %p102, %p103
      %p105 = scmp.ne.s32.totalorder %s94, %s97
      %p106 = scmp.eq.s32.totalorder %s42, 77
      %p107 = por %p105, %p106
      %p108 = scmp.ne.s32.totalorder %s97, %s98
      %p109 = scmp.eq.s32.totalorder %s42, 0
      %p110 = por %p108, %p109
      %p111 = scmp.ne.s32.totalorder %s97, %s98
      %p112 = scmp.eq.s32.totalorder %s43, 77
      %p113 = por %p111, %p112
      %p115 = scmp.ne.s32.totalorder %s98, %s114
      %p116 = scmp.eq.s32.totalorder %s43, 0
      %p117 = por %p115, %p116
      %s118 = ssub.s32 %s44, %s63
      %p119 = scmp.eq.s32.totalorder %s118, 0
      %s121 = sadd.s32 %s120, 1
      %s122 = scalar_select %p119, %s120, %s121
      %p125 = pneg %p119
      %p126 = scmp.eq.s32.totalorder %s37, 77
      %p127 = por %p125, %p126
      %p128 = scmp.ne.s32.totalorder %s120, %s123
      %p129 = scmp.eq.s32.totalorder %s37, 0
      %p130 = por %p128, %p129
      %p131 = scmp.ne.s32.totalorder %s120, %s123
      %p132 = scmp.eq.s32.totalorder %s42, 77
      %p133 = por %p131, %p132
      %p134 = scmp.ne.s32.totalorder %s123, %s124
      %p135 = scmp.eq.s32.totalorder %s42, 0
      %p136 = por %p134, %p135
      %p137 = scmp.ne.s32.totalorder %s123, %s124
      %p138 = scmp.eq.s32.totalorder %s43, 77
      %p139 = por %p137, %p138
      %p141 = scmp.ne.s32.totalorder %s124, %s140
      %p142 = scmp.eq.s32.totalorder %s43, 0
      %p143 = por %p141, %p142
      %s144 = ssub.s32 %s44, %s63
      %p145 = scmp.eq.s32.totalorder %s144, 0
      %s147 = sadd.s32 %s146, 1
      %s148 = scalar_select %p145, %s146, %s147
      %p151 = pneg %p145
      %p152 = scmp.eq.s32.totalorder %s37, 77
      %p153 = por %p151, %p152
      %p154 = scmp.ne.s32.totalorder %s146, %s149
      %p155 = scmp.eq.s32.totalorder %s37, 0
      %p156 = por %p154, %p155
      %p157 = scmp.ne.s32.totalorder %s146, %s149
      %p158 = scmp.eq.s32.totalorder %s42, 77
      %p159 = por %p157, %p158
      %p160 = scmp.ne.s32.totalorder %s149, %s150
      %p161 = scmp.eq.s32.totalorder %s42, 0
      %p162 = por %p160, %p161
      %p163 = scmp.ne.s32.totalorder %s149, %s150
      %p164 = scmp.eq.s32.totalorder %s43, 77
      %p165 = por %p163, %p164
      %p167 = scmp.ne.s32.totalorder %s150, %s166
      %p168 = scmp.eq.s32.totalorder %s43, 0
      %p169 = por %p167, %p168
      %s170 = ssub.s32 %s44, %s63
      %p171 = scmp.eq.s32.totalorder %s170, 0
      %s173 = sadd.s32 %s172, 1
      %s174 = scalar_select %p171, %s172, %s173
      %p177 = pneg %p171
      %p178 = scmp.eq.s32.totalorder %s37, 77
      %p179 = por %p177, %p178
      %p180 = scmp.ne.s32.totalorder %s172, %s175
      %p181 = scmp.eq.s32.totalorder %s37, 0
      %p182 = por %p180, %p181
      %p183 = scmp.ne.s32.totalorder %s172, %s175
      %p184 = scmp.eq.s32.totalorder %s42, 77
      %p185 = por %p183, %p184
      %p186 = scmp.ne.s32.totalorder %s175, %s176
      %p187 = scmp.eq.s32.totalorder %s42, 0
      %p188 = por %p186, %p187
      %p189 = scmp.ne.s32.totalorder %s175, %s176
      %p190 = scmp.eq.s32.totalorder %s43, 77
      %p191 = por %p189, %p190
      %p193 = scmp.ne.s32.totalorder %s176, %s192
      %p194 = scmp.eq.s32.totalorder %s43, 0
      %p195 = por %p193, %p194
      %s196 = ssub.s32 %s44, %s63
      %s197 = ssub.s32 %s46, %s55
      %s198 = sor.u32 %s196, %s197
      %p199 = scmp.eq.s32.totalorder %s198, 0
      %s201 = sadd.s32 %s200, 1
      %s202 = scalar_select %p199, %s200, %s201
      %p205 = pneg %p199
      %p206 = scmp.eq.s32.totalorder %s37, 77
      %p207 = por %p205, %p206
      %p208 = scmp.ne.s32.totalorder %s200, %s203
      %p209 = scmp.eq.s32.totalorder %s37, 0
      %p210 = por %p208, %p209
      %p211 = scmp.ne.s32.totalorder %s200, %s203
      %p212 = scmp.eq.s32.totalorder %s42, 77
      %p213 = por %p211, %p212
      %p214 = scmp.ne.s32.totalorder %s203, %s204
      %p215 = scmp.eq.s32.totalorder %s42, 0
      %p216 = por %p214, %p215
      %p217 = scmp.ne.s32.totalorder %s203, %s204
      %p218 = scmp.eq.s32.totalorder %s43, 77
      %p219 = por %p217, %p218
      %p221 = scmp.ne.s32.totalorder %s204, %s220
      %p222 = scmp.eq.s32.totalorder %s43, 0
      %p223 = por %p221, %p222
      %s224 = ssub.s32 %s44, %s63
      %p225 = scmp.eq.s32.totalorder %s224, 0
      %s227 = sadd.s32 %s226, 1
      %s228 = scalar_select %p225, %s226, %s227
      %p231 = pneg %p225
      %p232 = scmp.eq.s32.totalorder %s37, 77
      %p233 = por %p231, %p232
      %p234 = scmp.ne.s32.totalorder %s226, %s229
      %p235 = scmp.eq.s32.totalorder %s37, 0
      %p236 = por %p234, %p235
      %p237 = scmp.ne.s32.totalorder %s226, %s229
      %p238 = scmp.eq.s32.totalorder %s42, 77
      %p239 = por %p237, %p238
      %p240 = scmp.ne.s32.totalorder %s229, %s230
      %p241 = scmp.eq.s32.totalorder %s42, 0
      %p242 = por %p240, %p241
      %p243 = scmp.ne.s32.totalorder %s229, %s230
      %p244 = scmp.eq.s32.totalorder %s43, 77
      %p245 = por %p243, %p244
      %p247 = scmp.ne.s32.totalorder %s230, %s246
      %p248 = scmp.eq.s32.totalorder %s43, 0
      %p249 = por %p247, %p248
      %s250 = ssub.s32 %s44, %s63
      %s251 = ssub.s32 %s45, %s59
      %s252 = sor.u32 %s250, %s251
      %p253 = scmp.eq.s32.totalorder %s252, 0
      %s255 = sadd.s32 %s254, 1
      %s256 = scalar_select %p253, %s254, %s255
      %p259 = pneg %p253
      %p260 = scmp.eq.s32.totalorder %s37, 77
      %p261 = por %p259, %p260
      %p262 = scmp.ne.s32.totalorder %s254, %s257
      %p263 = scmp.eq.s32.totalorder %s37, 0
      %p264 = por %p262, %p263
      %p265 = scmp.ne.s32.totalorder %s254, %s257
      %p266 = scmp.eq.s32.totalorder %s42, 77
      %p267 = por %p265, %p266
      %p268 = scmp.ne.s32.totalorder %s257, %s258
      %p269 = scmp.eq.s32.totalorder %s42, 0
      %p270 = por %p268, %p269
      %p271 = scmp.ne.s32.totalorder %s257, %s258
      %p272 = scmp.eq.s32.totalorder %s43, 77
      %p273 = por %p271, %p272
      %p275 = scmp.ne.s32.totalorder %s258, %s274
      %p276 = scmp.eq.s32.totalorder %s43, 0
      %p277 = por %p275, %p276
      %p278 = scmp.le.s32.totalorder 1, %s37
      %p279 = scmp.lt.s32.totalorder %s37, 79
      %p280 = pnand %p278, %p279
      %p281 = pneg %p280
      // Predicated region
      $region9: #{adapted_clipseg_forward.3} parent=5 // pred_check
        _
      $region10: #{adapted_clipseg_forward.3} parent=5 // pred_check_branch
        %283 = sbr.rel (%p280) target = $region12
      $region11: #{adapted_clipseg_forward.3} parent=5 // pred_region
        %s284 = ssub.s32 %s37, 1
      $region12: #{adapted_clipseg_forward.3} parent=5 // pred_fallthru
        _
      %p285 = scmp.lt.s32.totalorder %s37, 78
      // Predicated region
      $region13: #{adapted_clipseg_forward.3} parent=5 // pred_check
        %p286 = pneg %p285
      $region14: #{adapted_clipseg_forward.3} parent=5 // pred_check_branch
        %288 = sbr.rel (%p286) target = $region16
      $region15: #{adapted_clipseg_forward.3} parent=5 // pred_region
        // Predicated region
        $region17: #{adapted_clipseg_forward.3} parent=15 // pred_check
          %p289 = pneg %p78
        $region18: #{adapted_clipseg_forward.3} parent=15 // pred_check_branch
          %291 = sbr.rel (%p289) target = $region20
        $region19: #{adapted_clipseg_forward.3} parent=15 // pred_region
          %s292 = sand.u32 %s68, 1
          %s293 = scalar_lea.sflag [#allocation7], %s292
          %s294 = sand.u32 %s68, 1
          %s295 = smul.addr %s294, 64
          %s296 = scalar_lea.vmem [#allocation6], %s295
          %s297 = smul.u32 16, %s45
          %299 = vsyncadd %s293, 0
          %s300 = smul.addr %s46, 32
          %s301 = sadd.s32 %s297, %s300
          %s302 = smul.addr %s301, 4
          %s303 = scalar_lea.hbm %s1, %s302
          %s304 = sshll.u32 %s303, 4
          %s305 = int_to_ptr.hbm [resolvable:$true] %s304
          %s306 = sshll.u32 %s296, 4
          %s307 = int_to_ptr.vmem [resolvable:$true] %s306
          %312 = dma.hbm_to_vmem [thread:$0]  %s305, 1024, %s307, %s293, 64, 64, 4
        $region20: #{adapted_clipseg_forward.3} parent=15 // pred_fallthru
          _
        // Predicated region
        $region21: #{adapted_clipseg_forward.3} parent=15 // pred_check
          %p313 = pneg %p104
        $region22: #{adapted_clipseg_forward.3} parent=15 // pred_check_branch
          %315 = sbr.rel (%p313) target = $region24
        $region23: #{adapted_clipseg_forward.3} parent=15 // pred_region
          %s316 = sand.u32 %s37, 1
          %s317 = scalar_lea.sflag [#allocation10], %s316
          %s318 = sand.u32 %s94, 1
          %s319 = smul.addr %s318, 64
          %s320 = scalar_lea.vmem [#allocation9], %s319
          %322 = vsyncadd %s317, 0
          %s323 = smul.addr %s44, 16
          %s324 = smul.addr %s323, 4
          %s325 = scalar_lea.hbm %s2, %s324
          %s326 = sshll.u32 %s325, 4
          %s327 = int_to_ptr.hbm [resolvable:$true] %s326
          %s328 = sshll.u32 %s320, 4
          %s329 = int_to_ptr.vmem [resolvable:$true] %s328
          %334 = dma.hbm_to_vmem [thread:$0]  %s327, 1024, %s329, %s317, 64, 64, 4
        $region24: #{adapted_clipseg_forward.3} parent=15 // pred_fallthru
          _
        // Predicated region
        $region25: #{adapted_clipseg_forward.3} parent=15 // pred_check
          %p335 = pneg %p130
        $region26: #{adapted_clipseg_forward.3} parent=15 // pred_check_branch
          %337 = sbr.rel (%p335) target = $region28
        $region27: #{adapted_clipseg_forward.3} parent=15 // pred_region
          %s338 = sand.u32 %s37, 1
          %s339 = scalar_lea.sflag [#allocation10], %s338
          %s340 = sand.u32 %s120, 1
          %s341 = scalar_lea.vmem [#allocation11], %s340
          %343 = vsyncadd %s339, 0
          %s344 = scalar_lea.hbm %s3, %s44
          %s346 = sshll.u32 %s344, 4
          %s347 = int_to_ptr.hbm [resolvable:$true] %s346
          %s348 = sshll.u32 %s341, 4
          %s349 = int_to_ptr.vmem [resolvable:$true] %s348
          %351 = dma.hbm_to_vmem [thread:$0]  %s347, 16, %s349, %s339
        $region28: #{adapted_clipseg_forward.3} parent=15 // pred_fallthru
          _
        // Predicated region
        $region29: #{adapted_clipseg_forward.3} parent=15 // pred_check
          %p352 = pneg %p156
        $region30: #{adapted_clipseg_forward.3} parent=15 // pred_check_branch
          %354 = sbr.rel (%p352) target = $region32
        $region31: #{adapted_clipseg_forward.3} parent=15 // pred_region
          %s355 = sand.u32 %s37, 1
          %s356 = scalar_lea.sflag [#allocation13], %s355
          %s357 = sand.u32 %s146, 1
          %s358 = smul.addr %s357, 64
          %s359 = scalar_lea.vmem [#allocation12], %s358
          %361 = vsyncadd %s356, 0
          %s362 = smul.addr %s44, 16
          %s363 = smul.addr %s362, 4
          %s364 = scalar_lea.hbm %s4, %s363
          %s365 = sshll.u32 %s364, 4
          %s366 = int_to_ptr.hbm [resolvable:$true] %s365
          %s367 = sshll.u32 %s359, 4
          %s368 = int_to_ptr.vmem [resolvable:$true] %s367
          %373 = dma.hbm_to_vmem [thread:$0]  %s366, 1024, %s368, %s356, 64, 64, 4
        $region32: #{adapted_clipseg_forward.3} parent=15 // pred_fallthru
          _
        // Predicated region
        $region33: #{adapted_clipseg_forward.3} parent=15 // pred_check
          %p374 = pneg %p182
        $region34: #{adapted_clipseg_forward.3} parent=15 // pred_check_branch
          %376 = sbr.rel (%p374) target = $region36
        $region35: #{adapted_clipseg_forward.3} parent=15 // pred_region
          %s377 = sand.u32 %s37, 1
          %s378 = scalar_lea.sflag [#allocation13], %s377
          %s379 = sand.u32 %s172, 1
          %s380 = scalar_lea.vmem [#allocation14], %s379
          %382 = vsyncadd %s378, 0
          %s383 = scalar_lea.hbm %s5, %s44
          %s385 = sshll.u32 %s383, 4
          %s386 = int_to_ptr.hbm [resolvable:$true] %s385
          %s387 = sshll.u32 %s380, 4
          %s388 = int_to_ptr.vmem [resolvable:$true] %s387
          %390 = dma.hbm_to_vmem [thread:$0]  %s386, 16, %s388, %s378
        $region36: #{adapted_clipseg_forward.3} parent=15 // pred_fallthru
          _
        // Predicated region
        $region37: #{adapted_clipseg_forward.3} parent=15 // pred_check
          %p391 = pneg %p210
        $region38: #{adapted_clipseg_forward.3} parent=15 // pred_check_branch
          %393 = sbr.rel (%p391) target = $region40
        $region39: #{adapted_clipseg_forward.3} parent=15 // pred_region
          %s394 = sand.u32 %s37, 1
          %s395 = scalar_lea.sflag [#allocation16], %s394
          %s396 = sand.u32 %s200, 1
          %s397 = smul.addr %s396, 64
          %s398 = scalar_lea.vmem [#allocation15], %s397
          %s399 = smul.u32 16, %s46
          %401 = vsyncadd %s395, 0
          %s402 = smul.addr %s44, 208
          %s403 = sadd.s32 %s399, %s402
          %s404 = smul.addr %s403, 4
          %s405 = scalar_lea.hbm %s6, %s404
          %s406 = sshll.u32 %s405, 4
          %s407 = int_to_ptr.hbm [resolvable:$true] %s406
          %s408 = sshll.u32 %s398, 4
          %s409 = int_to_ptr.vmem [resolvable:$true] %s408
          %414 = dma.hbm_to_vmem [thread:$0]  %s407, 1024, %s409, %s395, 64, 64, 4
        $region40: #{adapted_clipseg_forward.3} parent=15 // pred_fallthru
          _
        // Predicated region
        $region41: #{adapted_clipseg_forward.3} parent=15 // pred_check
          %p415 = pneg %p236
        $region42: #{adapted_clipseg_forward.3} parent=15 // pred_check_branch
          %417 = sbr.rel (%p415) target = $region44
        $region43: #{adapted_clipseg_forward.3} parent=15 // pred_region
          %s418 = sand.u32 %s37, 1
          %s419 = scalar_lea.sflag [#allocation16], %s418
          %s420 = sand.u32 %s226, 1
          %s421 = scalar_lea.vmem [#allocation17], %s420
          %423 = vsyncadd %s419, 0
          %s424 = scalar_lea.hbm %s7, %s44
          %s426 = sshll.u32 %s424, 4
          %s427 = int_to_ptr.hbm [resolvable:$true] %s426
          %s428 = sshll.u32 %s421, 4
          %s429 = int_to_ptr.vmem [resolvable:$true] %s428
          %431 = dma.hbm_to_vmem [thread:$0]  %s427, 16, %s429, %s419
        $region44: #{adapted_clipseg_forward.3} parent=15 // pred_fallthru
          _
      $region16: #{adapted_clipseg_forward.3} parent=5 // pred_fallthru
        _
      %p432 = scmp.le.s32.totalorder 1, %s37
      %p433 = scmp.lt.s32.totalorder %s37, 79
      %p434 = pnand %p432, %p433
      %p435 = pneg %p434
      // Predicated region
      $region45: #{adapted_clipseg_forward.3} parent=5 // pred_check
        _
      $region46: #{adapted_clipseg_forward.3} parent=5 // pred_check_branch
        %437 = sbr.rel (%p434) target = $region48
      $region47: #{adapted_clipseg_forward.3} parent=5 // pred_region
        %s438 = ssub.s32 %s37, 1
        %s439 = sand.u32 %s71, 1
        %s440 = scalar_lea.sflag [#allocation7], %s439
        %s441 = sand.u32 %s71, 1
        %s442 = smul.addr %s441, 64
        %s443 = scalar_lea.vmem [#allocation6], %s442
        // Predicated region
        $region49: #{adapted_clipseg_forward.3} parent=47 // pred_check
          %p444 = pneg %p84
        $region50: #{adapted_clipseg_forward.3} parent=47 // pred_check_branch
          %446 = sbr.rel (%p444) target = $region52
        $region51: #{adapted_clipseg_forward.3} parent=47 // pred_region
          %448 = dma.done %s440, 1024
        $region52: #{adapted_clipseg_forward.3} parent=47 // pred_fallthru
          _
        %s449 = sand.u32 %s42, 1
        %s450 = scalar_lea.sflag [#allocation10], %s449
        %s451 = sand.u32 %s97, 1
        %s452 = smul.addr %s451, 64
        %s453 = scalar_lea.vmem [#allocation9], %s452
        // Predicated region
        $region53: #{adapted_clipseg_forward.3} parent=47 // pred_check
          %p454 = pneg %p110
        $region54: #{adapted_clipseg_forward.3} parent=47 // pred_check_branch
          %456 = sbr.rel (%p454) target = $region56
        $region55: #{adapted_clipseg_forward.3} parent=47 // pred_region
          %458 = dma.done %s450, 1024
        $region56: #{adapted_clipseg_forward.3} parent=47 // pred_fallthru
          _
        %s459 = sand.u32 %s42, 1
        %s460 = scalar_lea.sflag [#allocation10], %s459
        %s461 = sand.u32 %s123, 1
        %s462 = scalar_lea.vmem [#allocation11], %s461
        // Predicated region
        $region57: #{adapted_clipseg_forward.3} parent=47 // pred_check
          %p463 = pneg %p136
        $region58: #{adapted_clipseg_forward.3} parent=47 // pred_check_branch
          %465 = sbr.rel (%p463) target = $region60
        $region59: #{adapted_clipseg_forward.3} parent=47 // pred_region
          %467 = dma.done %s460, 16
        $region60: #{adapted_clipseg_forward.3} parent=47 // pred_fallthru
          _
        %s468 = sand.u32 %s42, 1
        %s469 = scalar_lea.sflag [#allocation13], %s468
        %s470 = sand.u32 %s149, 1
        %s471 = smul.addr %s470, 64
        %s472 = scalar_lea.vmem [#allocation12], %s471
        // Predicated region
        $region61: #{adapted_clipseg_forward.3} parent=47 // pred_check
          %p473 = pneg %p162
        $region62: #{adapted_clipseg_forward.3} parent=47 // pred_check_branch
          %475 = sbr.rel (%p473) target = $region64
        $region63: #{adapted_clipseg_forward.3} parent=47 // pred_region
          %477 = dma.done %s469, 1024
        $region64: #{adapted_clipseg_forward.3} parent=47 // pred_fallthru
          _
        %s478 = sand.u32 %s42, 1
        %s479 = scalar_lea.sflag [#allocation13], %s478
        %s480 = sand.u32 %s175, 1
        %s481 = scalar_lea.vmem [#allocation14], %s480
        // Predicated region
        $region65: #{adapted_clipseg_forward.3} parent=47 // pred_check
          %p482 = pneg %p188
        $region66: #{adapted_clipseg_forward.3} parent=47 // pred_check_branch
          %484 = sbr.rel (%p482) target = $region68
        $region67: #{adapted_clipseg_forward.3} parent=47 // pred_region
          %486 = dma.done %s479, 16
        $region68: #{adapted_clipseg_forward.3} parent=47 // pred_fallthru
          _
        %s487 = sand.u32 %s42, 1
        %s488 = scalar_lea.sflag [#allocation16], %s487
        %s489 = sand.u32 %s203, 1
        %s490 = smul.addr %s489, 64
        %s491 = scalar_lea.vmem [#allocation15], %s490
        // Predicated region
        $region69: #{adapted_clipseg_forward.3} parent=47 // pred_check
          %p492 = pneg %p216
        $region70: #{adapted_clipseg_forward.3} parent=47 // pred_check_branch
          %494 = sbr.rel (%p492) target = $region72
        $region71: #{adapted_clipseg_forward.3} parent=47 // pred_region
          %496 = dma.done %s488, 1024
        $region72: #{adapted_clipseg_forward.3} parent=47 // pred_fallthru
          _
        %s497 = sand.u32 %s42, 1
        %s498 = scalar_lea.sflag [#allocation16], %s497
        %s499 = sand.u32 %s229, 1
        %s500 = scalar_lea.vmem [#allocation17], %s499
        // Predicated region
        $region73: #{adapted_clipseg_forward.3} parent=47 // pred_check
          %p501 = pneg %p242
        $region74: #{adapted_clipseg_forward.3} parent=47 // pred_check_branch
          %503 = sbr.rel (%p501) target = $region76
        $region75: #{adapted_clipseg_forward.3} parent=47 // pred_region
          %505 = dma.done %s498, 16
        $region76: #{adapted_clipseg_forward.3} parent=47 // pred_fallthru
          _
        %s506 = sand.u32 %s71, 1
        %s507 = scalar_lea.sflag [#allocation7], %s506
        %s508 = sand.u32 %s71, 1
        %s509 = smul.addr %s508, 64
        %s510 = scalar_lea.vmem [#allocation6], %s509
        %p511 = pneg %p84
        %p512 = pneg %p81
        %s513 = sand.u32 %s42, 1
        %s514 = scalar_lea.sflag [#allocation10], %s513
        %s515 = sand.u32 %s97, 1
        %s516 = smul.addr %s515, 64
        %s517 = scalar_lea.vmem [#allocation9], %s516
        %p518 = pneg %p110
        %p519 = pneg %p107
        %s520 = sand.u32 %s42, 1
        %s521 = scalar_lea.sflag [#allocation10], %s520
        %s522 = sand.u32 %s123, 1
        %s523 = scalar_lea.vmem [#allocation11], %s522
        %p524 = pneg %p136
        %p525 = pneg %p133
        %s526 = sand.u32 %s42, 1
        %s527 = scalar_lea.sflag [#allocation13], %s526
        %s528 = sand.u32 %s149, 1
        %s529 = smul.addr %s528, 64
        %s530 = scalar_lea.vmem [#allocation12], %s529
        %p531 = pneg %p162
        %p532 = pneg %p159
        %s533 = sand.u32 %s42, 1
        %s534 = scalar_lea.sflag [#allocation13], %s533
        %s535 = sand.u32 %s175, 1
        %s536 = scalar_lea.vmem [#allocation14], %s535
        %p537 = pneg %p188
        %p538 = pneg %p185
        %s539 = sand.u32 %s42, 1
        %s540 = scalar_lea.sflag [#allocation16], %s539
        %s541 = sand.u32 %s203, 1
        %s542 = smul.addr %s541, 64
        %s543 = scalar_lea.vmem [#allocation15], %s542
        %p544 = pneg %p216
        %p545 = pneg %p213
        %s546 = sand.u32 %s42, 1
        %s547 = scalar_lea.sflag [#allocation16], %s546
        %s548 = sand.u32 %s229, 1
        %s549 = scalar_lea.vmem [#allocation17], %s548
        %p550 = pneg %p242
        %p551 = pneg %p239
        %p552 = pneg %p270
        %p553 = pneg %p267
        %s554 = sand.u32 %s257, 1
        %s555 = scalar_lea.sflag [#allocation8], %s554
        %s556 = sand.u32 %s257, 1
        %s557 = smul.addr %s556, 128
        %s558 = scalar_lea.vmem [#allocation18], %s557
        %s559 = smul.u32 16, %s48
        %s560 = smul.u32 16, %s49
        %s561 = smul.u32 16, %s48
        %p562 = scmp.eq.s32.totalorder %s49, 0
        // Predicated region
        $region77: #{adapted_clipseg_forward.3} parent=47 // pred_check
          %p563 = pneg %p562
        $region78: #{adapted_clipseg_forward.3} parent=47 // pred_check_branch
          %565 = sbr.rel (%p563) target = $region80
        $region79: #{adapted_clipseg_forward.3} parent=47 // pred_region
          %566 = vst [vmem:[#allocation2] sm:$0xff] 0.0
          %567 = vst [vmem:[#allocation2 + $0x8] sm:$0xff] 0.0
          %568 = vst [vmem:[#allocation2 + $0x10] sm:$0xff] 0.0
          %569 = vst [vmem:[#allocation2 + $0x18] sm:$0xff] 0.0
          %570 = vst [vmem:[#allocation2 + $0x20] sm:$0xff] 0.0
          %571 = vst [vmem:[#allocation2 + $0x28] sm:$0xff] 0.0
          %572 = vst [vmem:[#allocation2 + $0x30] sm:$0xff] 0.0
          %573 = vst [vmem:[#allocation2 + $0x38] sm:$0xff] 0.0
          %574 = vst [vmem:[#allocation2 + $0x40] sm:$0xff] 0.0
          %575 = vst [vmem:[#allocation2 + $0x48] sm:$0xff] 0.0
          %576 = vst [vmem:[#allocation2 + $0x50] sm:$0xff] 0.0
          %577 = vst [vmem:[#allocation2 + $0x58] sm:$0xff] 0.0
          %578 = vst [vmem:[#allocation2 + $0x60] sm:$0xff] 0.0
          %579 = vst [vmem:[#allocation2 + $0x68] sm:$0xff] 0.0
          %580 = vst [vmem:[#allocation2 + $0x70] sm:$0xff] 0.0
          %581 = vst [vmem:[#allocation2 + $0x78] sm:$0xff] 0.0
        $region80: #{adapted_clipseg_forward.3} parent=47 // pred_fallthru
          _
        %s582 = sld [smem:[#allocation5 + %s47]]
        %p583 = scmp.eq.s32.totalorder %s49, %s582
        // Predicated region
        $region81: #{adapted_clipseg_forward.3} parent=47 // pred_check
          %p584 = pneg %p583
        $region82: #{adapted_clipseg_forward.3} parent=47 // pred_check_branch
          %586 = sbr.rel (%p584) target = $region84
        $region83: #{adapted_clipseg_forward.3} parent=47 // pred_region
          %v587 = vld [vmem:[%s443] sm:$0xf]
          %v588 = vld [vmem:[%s443 + $0x4] sm:$0xf]
          %v589 = vld [vmem:[%s443 + $0x8] sm:$0xf]
          %v590 = vld [vmem:[%s443 + $0xc] sm:$0xf]
          %v591 = vld [vmem:[%s443 + $0x10] sm:$0xf]
          %v592 = vld [vmem:[%s443 + $0x14] sm:$0xf]
          %v593 = vld [vmem:[%s443 + $0x18] sm:$0xf]
          %v594 = vld [vmem:[%s443 + $0x1c] sm:$0xf]
          %v595 = vld [vmem:[%s443 + $0x20] sm:$0xf]
          %v596 = vld [vmem:[%s443 + $0x24] sm:$0xf]
          %v597 = vld [vmem:[%s443 + $0x28] sm:$0xf]
          %v598 = vld [vmem:[%s443 + $0x2c] sm:$0xf]
          %v599 = vld [vmem:[%s443 + $0x30] sm:$0xf]
          %v600 = vld [vmem:[%s443 + $0x34] sm:$0xf]
          %v601 = vld [vmem:[%s443 + $0x38] sm:$0xf]
          %v602 = vld [vmem:[%s443 + $0x3c] sm:$0xf]
          %603 = vst [vmem:[#allocation3] sm:$0xf] %v587
          %604 = vst [vmem:[#allocation3 + $0x4] sm:$0xf] %v588
          %605 = vst [vmem:[#allocation3 + $0x8] sm:$0xf] %v589
          %606 = vst [vmem:[#allocation3 + $0xc] sm:$0xf] %v590
          %607 = vst [vmem:[#allocation3 + $0x10] sm:$0xf] %v591
          %608 = vst [vmem:[#allocation3 + $0x14] sm:$0xf] %v592
          %609 = vst [vmem:[#allocation3 + $0x18] sm:$0xf] %v593
          %610 = vst [vmem:[#allocation3 + $0x1c] sm:$0xf] %v594
          %611 = vst [vmem:[#allocation3 + $0x20] sm:$0xf] %v595
          %612 = vst [vmem:[#allocation3 + $0x24] sm:$0xf] %v596
          %613 = vst [vmem:[#allocation3 + $0x28] sm:$0xf] %v597
          %614 = vst [vmem:[#allocation3 + $0x2c] sm:$0xf] %v598
          %615 = vst [vmem:[#allocation3 + $0x30] sm:$0xf] %v599
          %616 = vst [vmem:[#allocation3 + $0x34] sm:$0xf] %v600
          %617 = vst [vmem:[#allocation3 + $0x38] sm:$0xf] %v601
          %618 = vst [vmem:[#allocation3 + $0x3c] sm:$0xf] %v602
        $region84: #{adapted_clipseg_forward.3} parent=47 // pred_fallthru
          _
        %v619 = vld [vmem:[#allocation2] sm:$0xff]
        %v620 = vld [vmem:[#allocation2 + $0x8] sm:$0xff]
        %v621 = vld [vmem:[#allocation2 + $0x10] sm:$0xff]
        %v622 = vld [vmem:[#allocation2 + $0x18] sm:$0xff]
        %v623 = vld [vmem:[#allocation2 + $0x20] sm:$0xff]
        %v624 = vld [vmem:[#allocation2 + $0x28] sm:$0xff]
        %v625 = vld [vmem:[#allocation2 + $0x30] sm:$0xff]
        %v626 = vld [vmem:[#allocation2 + $0x38] sm:$0xff]
        %v627 = vld [vmem:[#allocation2 + $0x40] sm:$0xff]
        %v628 = vld [vmem:[#allocation2 + $0x48] sm:$0xff]
        %v629 = vld [vmem:[#allocation2 + $0x50] sm:$0xff]
        %v630 = vld [vmem:[#allocation2 + $0x58] sm:$0xff]
        %v631 = vld [vmem:[#allocation2 + $0x60] sm:$0xff]
        %v632 = vld [vmem:[#allocation2 + $0x68] sm:$0xff]
        %v633 = vld [vmem:[#allocation2 + $0x70] sm:$0xff]
        %v634 = vld [vmem:[#allocation2 + $0x78] sm:$0xff]
        %v635 = vld [vmem:[%s443] sm:$0xf]
        %v636 = vld [vmem:[%s443 + $0x4] sm:$0xf]
        %v637 = vld [vmem:[%s443 + $0x8] sm:$0xf]
        %v638 = vld [vmem:[%s443 + $0xc] sm:$0xf]
        %v639 = vld [vmem:[%s443 + $0x10] sm:$0xf]
        %v640 = vld [vmem:[%s443 + $0x14] sm:$0xf]
        %v641 = vld [vmem:[%s443 + $0x18] sm:$0xf]
        %v642 = vld [vmem:[%s443 + $0x1c] sm:$0xf]
        %v643 = vld [vmem:[%s443 + $0x20] sm:$0xf]
        %v644 = vld [vmem:[%s443 + $0x24] sm:$0xf]
        %v645 = vld [vmem:[%s443 + $0x28] sm:$0xf]
        %v646 = vld [vmem:[%s443 + $0x2c] sm:$0xf]
        %v647 = vld [vmem:[%s443 + $0x30] sm:$0xf]
        %v648 = vld [vmem:[%s443 + $0x34] sm:$0xf]
        %v649 = vld [vmem:[%s443 + $0x38] sm:$0xf]
        %v650 = vld [vmem:[%s443 + $0x3c] sm:$0xf]
        %v651 = vld [vmem:[%s491] sm:$0xf]
        %v652 = vld [vmem:[%s491 + $0x4] sm:$0xf]
        %v653 = vld [vmem:[%s491 + $0x8] sm:$0xf]
        %v654 = vld [vmem:[%s491 + $0xc] sm:$0xf]
        %v655 = vld [vmem:[%s491 + $0x10] sm:$0xf]
        %v656 = vld [vmem:[%s491 + $0x14] sm:$0xf]
        %v657 = vld [vmem:[%s491 + $0x18] sm:$0xf]
        %v658 = vld [vmem:[%s491 + $0x1c] sm:$0xf]
        %v659 = vld [vmem:[%s491 + $0x20] sm:$0xf]
        %v660 = vld [vmem:[%s491 + $0x24] sm:$0xf]
        %v661 = vld [vmem:[%s491 + $0x28] sm:$0xf]
        %v662 = vld [vmem:[%s491 + $0x2c] sm:$0xf]
        %v663 = vld [vmem:[%s491 + $0x30] sm:$0xf]
        %v664 = vld [vmem:[%s491 + $0x34] sm:$0xf]
        %v665 = vld [vmem:[%s491 + $0x38] sm:$0xf]
        %v666 = vld [vmem:[%s491 + $0x3c] sm:$0xf]
        %v683 = vunpack.c.l.b16 %v635
        %v684 = vunpack.c.l.b16 %v636
        %v685 = vunpack.c.l.b16 %v637
        %v686 = vunpack.c.l.b16 %v638
        %v687 = vunpack.c.l.b16 %v639
        %v688 = vunpack.c.l.b16 %v640
        %v689 = vunpack.c.l.b16 %v641
        %v690 = vunpack.c.l.b16 %v642
        %v691 = vunpack.c.l.b16 %v643
        %v692 = vunpack.c.l.b16 %v644
        %v693 = vunpack.c.l.b16 %v645
        %v694 = vunpack.c.l.b16 %v646
        %v695 = vunpack.c.l.b16 %v647
        %v696 = vunpack.c.l.b16 %v648
        %v697 = vunpack.c.l.b16 %v649
        %v698 = vunpack.c.l.b16 %v650
        %v699 = vpack.c.b16 %v684, %v683
        %v700 = vpack.c.b16 %v686, %v685
        %v701 = vpack.c.b16 %v688, %v687
        %v702 = vpack.c.b16 %v690, %v689
        %v703 = vpack.c.b16 %v692, %v691
        %v704 = vpack.c.b16 %v694, %v693
        %v705 = vpack.c.b16 %v696, %v695
        %v706 = vpack.c.b16 %v698, %v697
        %v731 = vunpack.c.l.b16 %v651
        %v732 = vunpack.c.l.b16 %v652
        %v733 = vunpack.c.l.b16 %v653
        %v734 = vunpack.c.l.b16 %v654
        %v735 = vunpack.c.l.b16 %v655
        %v736 = vunpack.c.l.b16 %v656
        %v737 = vunpack.c.l.b16 %v657
        %v738 = vunpack.c.l.b16 %v658
        %v739 = vunpack.c.l.b16 %v659
        %v740 = vunpack.c.l.b16 %v660
        %v741 = vunpack.c.l.b16 %v661
        %v742 = vunpack.c.l.b16 %v662
        %v743 = vunpack.c.l.b16 %v663
        %v744 = vunpack.c.l.b16 %v664
        %v745 = vunpack.c.l.b16 %v665
        %v746 = vunpack.c.l.b16 %v666
        %v747 = vpack.c.b16 %v732, %v731
        %v748 = vpack.c.b16 %v734, %v733
        %v749 = vpack.c.b16 %v736, %v735
        %v750 = vpack.c.b16 %v738, %v737
        %v751 = vpack.c.b16 %v740, %v739
        %v752 = vpack.c.b16 %v742, %v741
        %v753 = vpack.c.b16 %v744, %v743
        %v754 = vpack.c.b16 %v746, %v745
        %763 = vmatpush.bf16.msra.mxu0 %v754
        %764 = vmatpush.bf16.msra.mxu0 %v753
        %765 = vmatpush.bf16.msra.mxu0 %v752
        %766 = vmatpush.bf16.msra.mxu0 %v751
        %767 = vmatpush.bf16.msra.mxu0 %v750
        %768 = vmatpush.bf16.msra.mxu0 %v749
        %769 = vmatpush.bf16.msra.mxu0 %v748
        %770 = vmatpush.bf16.msra.mxu0 %v747
        %771 = vmatmul.bf16.gmra.mxu0 %v699
        %v772 = vpop.f32.mrf.mxu0
        %v773 = vadd.f32 0.0, %v772
        %v774 = vpop.f32.mrf.mxu0
        %v775 = vadd.f32 0.0, %v774
        %776 = vmatmul.bf16.gmra.mxu0 %v700
        %v777 = vpop.f32.mrf.mxu0
        %v778 = vadd.f32 0.0, %v777
        %v779 = vpop.f32.mrf.mxu0
        %v780 = vadd.f32 0.0, %v779
        %781 = vmatmul.bf16.gmra.mxu0 %v701
        %v782 = vpop.f32.mrf.mxu0
        %v783 = vadd.f32 0.0, %v782
        %v784 = vpop.f32.mrf.mxu0
        %v785 = vadd.f32 0.0, %v784
        %786 = vmatmul.bf16.gmra.mxu0 %v702
        %v787 = vpop.f32.mrf.mxu0
        %v788 = vadd.f32 0.0, %v787
        %v789 = vpop.f32.mrf.mxu0
        %v790 = vadd.f32 0.0, %v789
        %791 = vmatmul.bf16.gmra.mxu0 %v703
        %v792 = vpop.f32.mrf.mxu0
        %v793 = vadd.f32 0.0, %v792
        %v794 = vpop.f32.mrf.mxu0
        %v795 = vadd.f32 0.0, %v794
        %796 = vmatmul.bf16.gmra.mxu0 %v704
        %v797 = vpop.f32.mrf.mxu0
        %v798 = vadd.f32 0.0, %v797
        %v799 = vpop.f32.mrf.mxu0
        %v800 = vadd.f32 0.0, %v799
        %801 = vmatmul.bf16.gmra.mxu0 %v705
        %v802 = vpop.f32.mrf.mxu0
        %v803 = vadd.f32 0.0, %v802
        %v804 = vpop.f32.mrf.mxu0
        %v805 = vadd.f32 0.0, %v804
        %806 = vmatmul.bf16.gmra.mxu0 %v706
        %v807 = vpop.f32.mrf.mxu0
        %v808 = vadd.f32 0.0, %v807
        %v809 = vpop.f32.mrf.mxu0
        %v810 = vadd.f32 0.0, %v809
        %811 = vdwg.mxu0
        %v812 = vadd.f32 %v619, %v773
        %v813 = vadd.f32 %v620, %v775
        %v814 = vadd.f32 %v621, %v778
        %v815 = vadd.f32 %v622, %v780
        %v816 = vadd.f32 %v623, %v783
        %v817 = vadd.f32 %v624, %v785
        %v818 = vadd.f32 %v625, %v788
        %v819 = vadd.f32 %v626, %v790
        %v820 = vadd.f32 %v627, %v793
        %v821 = vadd.f32 %v628, %v795
        %v822 = vadd.f32 %v629, %v798
        %v823 = vadd.f32 %v630, %v800
        %v824 = vadd.f32 %v631, %v803
        %v825 = vadd.f32 %v632, %v805
        %v826 = vadd.f32 %v633, %v808
        %v827 = vadd.f32 %v634, %v810
        %828 = vst [vmem:[#allocation2] sm:$0xff] %v812
        %829 = vst [vmem:[#allocation2 + $0x8] sm:$0xff] %v813
        %830 = vst [vmem:[#allocation2 + $0x10] sm:$0xff] %v814
        %831 = vst [vmem:[#allocation2 + $0x18] sm:$0xff] %v815
        %832 = vst [vmem:[#allocation2 + $0x20] sm:$0xff] %v816
        %833 = vst [vmem:[#allocation2 + $0x28] sm:$0xff] %v817
        %834 = vst [vmem:[#allocation2 + $0x30] sm:$0xff] %v818
        %835 = vst [vmem:[#allocation2 + $0x38] sm:$0xff] %v819
        %836 = vst [vmem:[#allocation2 + $0x40] sm:$0xff] %v820
        %837 = vst [vmem:[#allocation2 + $0x48] sm:$0xff] %v821
        %838 = vst [vmem:[#allocation2 + $0x50] sm:$0xff] %v822
        %839 = vst [vmem:[#allocation2 + $0x58] sm:$0xff] %v823
        %840 = vst [vmem:[#allocation2 + $0x60] sm:$0xff] %v824
        %841 = vst [vmem:[#allocation2 + $0x68] sm:$0xff] %v825
        %842 = vst [vmem:[#allocation2 + $0x70] sm:$0xff] %v826
        %843 = vst [vmem:[#allocation2 + $0x78] sm:$0xff] %v827
        %p844 = scmp.eq.s32.totalorder %s49, 12
        // Predicated region
        $region85: #{adapted_clipseg_forward.3} parent=47 // pred_check
          %p845 = pneg %p844
        $region86: #{adapted_clipseg_forward.3} parent=47 // pred_check_branch
          %847 = sbr.rel (%p845) target = $region88
        $region87: #{adapted_clipseg_forward.3} parent=47 // pred_region
          %v848 = vld [vmem:[#allocation3] sm:$0xf]
          %v849 = vld [vmem:[#allocation3 + $0x4] sm:$0xf]
          %v850 = vld [vmem:[#allocation3 + $0x8] sm:$0xf]
          %v851 = vld [vmem:[#allocation3 + $0xc] sm:$0xf]
          %v852 = vld [vmem:[#allocation3 + $0x10] sm:$0xf]
          %v853 = vld [vmem:[#allocation3 + $0x14] sm:$0xf]
          %v854 = vld [vmem:[#allocation3 + $0x18] sm:$0xf]
          %v855 = vld [vmem:[#allocation3 + $0x1c] sm:$0xf]
          %v856 = vld [vmem:[#allocation3 + $0x20] sm:$0xf]
          %v857 = vld [vmem:[#allocation3 + $0x24] sm:$0xf]
          %v858 = vld [vmem:[#allocation3 + $0x28] sm:$0xf]
          %v859 = vld [vmem:[#allocation3 + $0x2c] sm:$0xf]
          %v860 = vld [vmem:[#allocation3 + $0x30] sm:$0xf]
          %v861 = vld [vmem:[#allocation3 + $0x34] sm:$0xf]
          %v862 = vld [vmem:[#allocation3 + $0x38] sm:$0xf]
          %v863 = vld [vmem:[#allocation3 + $0x3c] sm:$0xf]
          %v864 = vld [vmem:[%s453] sm:$0xf]
          %v865 = vld [vmem:[%s453 + $0x4] sm:$0xf]
          %v866 = vld [vmem:[%s453 + $0x8] sm:$0xf]
          %v867 = vld [vmem:[%s453 + $0xc] sm:$0xf]
          %v868 = vld [vmem:[%s453 + $0x10] sm:$0xf]
          %v869 = vld [vmem:[%s453 + $0x14] sm:$0xf]
          %v870 = vld [vmem:[%s453 + $0x18] sm:$0xf]
          %v871 = vld [vmem:[%s453 + $0x1c] sm:$0xf]
          %v872 = vld [vmem:[%s453 + $0x20] sm:$0xf]
          %v873 = vld [vmem:[%s453 + $0x24] sm:$0xf]
          %v874 = vld [vmem:[%s453 + $0x28] sm:$0xf]
          %v875 = vld [vmem:[%s453 + $0x2c] sm:$0xf]
          %v876 = vld [vmem:[%s453 + $0x30] sm:$0xf]
          %v877 = vld [vmem:[%s453 + $0x34] sm:$0xf]
          %v878 = vld [vmem:[%s453 + $0x38] sm:$0xf]
          %v879 = vld [vmem:[%s453 + $0x3c] sm:$0xf]
          %v880 = vld [vmem:[%s462] sm:$0x1]
          %v882 = vperm.slane %v880, 0
          %v900 = vunpack.c.l.b16 %v848
          %v901 = vunpack.c.l.b16 %v849
          %v902 = vunpack.c.l.b16 %v850
          %v903 = vunpack.c.l.b16 %v851
          %v904 = vunpack.c.l.b16 %v852
          %v905 = vunpack.c.l.b16 %v853
          %v906 = vunpack.c.l.b16 %v854
          %v907 = vunpack.c.l.b16 %v855
          %v908 = vunpack.c.l.b16 %v856
          %v909 = vunpack.c.l.b16 %v857
          %v910 = vunpack.c.l.b16 %v858
          %v911 = vunpack.c.l.b16 %v859
          %v912 = vunpack.c.l.b16 %v860
          %v913 = vunpack.c.l.b16 %v861
          %v914 = vunpack.c.l.b16 %v862
          %v915 = vunpack.c.l.b16 %v863
          %v916 = vpack.c.b16 %v901, %v900
          %v917 = vpack.c.b16 %v903, %v902
          %v918 = vpack.c.b16 %v905, %v904
          %v919 = vpack.c.b16 %v907, %v906
          %v920 = vpack.c.b16 %v909, %v908
          %v921 = vpack.c.b16 %v911, %v910
          %v922 = vpack.c.b16 %v913, %v912
          %v923 = vpack.c.b16 %v915, %v914
          %v948 = vunpack.c.l.b16 %v864
          %v949 = vunpack.c.l.b16 %v865
          %v950 = vunpack.c.l.b16 %v866
          %v951 = vunpack.c.l.b16 %v867
          %v952 = vunpack.c.l.b16 %v868
          %v953 = vunpack.c.l.b16 %v869
          %v954 = vunpack.c.l.b16 %v870
          %v955 = vunpack.c.l.b16 %v871
          %v956 = vunpack.c.l.b16 %v872
          %v957 = vunpack.c.l.b16 %v873
          %v958 = vunpack.c.l.b16 %v874
          %v959 = vunpack.c.l.b16 %v875
          %v960 = vunpack.c.l.b16 %v876
          %v961 = vunpack.c.l.b16 %v877
          %v962 = vunpack.c.l.b16 %v878
          %v963 = vunpack.c.l.b16 %v879
          %v964 = vpack.c.b16 %v949, %v948
          %v965 = vpack.c.b16 %v951, %v950
          %v966 = vpack.c.b16 %v953, %v952
          %v967 = vpack.c.b16 %v955, %v954
          %v968 = vpack.c.b16 %v957, %v956
          %v969 = vpack.c.b16 %v959, %v958
          %v970 = vpack.c.b16 %v961, %v960
          %v971 = vpack.c.b16 %v963, %v962
          %980 = vmatpush.bf16.msra.mxu0 %v971
          %981 = vmatpush.bf16.msra.mxu0 %v970
          %982 = vmatpush.bf16.msra.mxu0 %v969
          %983 = vmatpush.bf16.msra.mxu0 %v968
          %984 = vmatpush.bf16.msra.mxu0 %v967
          %985 = vmatpush.bf16.msra.mxu0 %v966
          %986 = vmatpush.bf16.msra.mxu0 %v965
          %987 = vmatpush.bf16.msra.mxu0 %v964
          %988 = vmatmul.bf16.gmra.mxu0 %v916
          %v989 = vpop.f32.mrf.mxu0
          %v990 = vadd.f32 %v882, %v989
          %v991 = vpop.f32.mrf.mxu0
          %v992 = vadd.f32 %v882, %v991
          %993 = vmatmul.bf16.gmra.mxu0 %v917
          %v994 = vpop.f32.mrf.mxu0
          %v995 = vadd.f32 %v882, %v994
          %v996 = vpop.f32.mrf.mxu0
          %v997 = vadd.f32 %v882, %v996
          %998 = vmatmul.bf16.gmra.mxu0 %v918
          %v999 = vpop.f32.mrf.mxu0
          %v1000 = vadd.f32 %v882, %v999
          %v1001 = vpop.f32.mrf.mxu0
          %v1002 = vadd.f32 %v882, %v1001
          %1003 = vmatmul.bf16.gmra.mxu0 %v919
          %v1004 = vpop.f32.mrf.mxu0
          %v1005 = vadd.f32 %v882, %v1004
          %v1006 = vpop.f32.mrf.mxu0
          %v1007 = vadd.f32 %v882, %v1006
          %1008 = vmatmul.bf16.gmra.mxu0 %v920
          %v1009 = vpop.f32.mrf.mxu0
          %v1010 = vadd.f32 %v882, %v1009
          %v1011 = vpop.f32.mrf.mxu0
          %v1012 = vadd.f32 %v882, %v1011
          %1013 = vmatmul.bf16.gmra.mxu0 %v921
          %v1014 = vpop.f32.mrf.mxu0
          %v1015 = vadd.f32 %v882, %v1014
          %v1016 = vpop.f32.mrf.mxu0
          %v1017 = vadd.f32 %v882, %v1016
          %1018 = vmatmul.bf16.gmra.mxu0 %v922
          %v1019 = vpop.f32.mrf.mxu0
          %v1020 = vadd.f32 %v882, %v1019
          %v1021 = vpop.f32.mrf.mxu0
          %v1022 = vadd.f32 %v882, %v1021
          %1023 = vmatmul.bf16.gmra.mxu0 %v923
          %v1024 = vpop.f32.mrf.mxu0
          %v1025 = vadd.f32 %v882, %v1024
          %v1026 = vpop.f32.mrf.mxu0
          %v1027 = vadd.f32 %v882, %v1026
          %1028 = vdwg.mxu0
          %v1029 = vmax.f32 %v990, 0.0
          %v1030 = vmax.f32 %v992, 0.0
          %v1031 = vmax.f32 %v995, 0.0
          %v1032 = vmax.f32 %v997, 0.0
          %v1033 = vmax.f32 %v1000, 0.0
          %v1034 = vmax.f32 %v1002, 0.0
          %v1035 = vmax.f32 %v1005, 0.0
          %v1036 = vmax.f32 %v1007, 0.0
          %v1037 = vmax.f32 %v1010, 0.0
          %v1038 = vmax.f32 %v1012, 0.0
          %v1039 = vmax.f32 %v1015, 0.0
          %v1040 = vmax.f32 %v1017, 0.0
          %v1041 = vmax.f32 %v1020, 0.0
          %v1042 = vmax.f32 %v1022, 0.0
          %v1043 = vmax.f32 %v1025, 0.0
          %v1044 = vmax.f32 %v1027, 0.0
          %v1045 = vpack.c.bf16 %v1030, %v1029
          %v1046 = vpack.c.bf16 %v1032, %v1031
          %v1047 = vpack.c.bf16 %v1034, %v1033
          %v1048 = vpack.c.bf16 %v1036, %v1035
          %v1049 = vpack.c.bf16 %v1038, %v1037
          %v1050 = vpack.c.bf16 %v1040, %v1039
          %v1051 = vpack.c.bf16 %v1042, %v1041
          %v1052 = vpack.c.bf16 %v1044, %v1043
          %v1053 = vld [vmem:[%s472] sm:$0xf]
          %v1054 = vld [vmem:[%s472 + $0x4] sm:$0xf]
          %v1055 = vld [vmem:[%s472 + $0x8] sm:$0xf]
          %v1056 = vld [vmem:[%s472 + $0xc] sm:$0xf]
          %v1057 = vld [vmem:[%s472 + $0x10] sm:$0xf]
          %v1058 = vld [vmem:[%s472 + $0x14] sm:$0xf]
          %v1059 = vld [vmem:[%s472 + $0x18] sm:$0xf]
          %v1060 = vld [vmem:[%s472 + $0x1c] sm:$0xf]
          %v1061 = vld [vmem:[%s472 + $0x20] sm:$0xf]
          %v1062 = vld [vmem:[%s472 + $0x24] sm:$0xf]
          %v1063 = vld [vmem:[%s472 + $0x28] sm:$0xf]
          %v1064 = vld [vmem:[%s472 + $0x2c] sm:$0xf]
          %v1065 = vld [vmem:[%s472 + $0x30] sm:$0xf]
          %v1066 = vld [vmem:[%s472 + $0x34] sm:$0xf]
          %v1067 = vld [vmem:[%s472 + $0x38] sm:$0xf]
          %v1068 = vld [vmem:[%s472 + $0x3c] sm:$0xf]
          %v1069 = vld [vmem:[%s481] sm:$0x1]
          %v1071 = vperm.slane %v1069, 0
          %v1089 = vunpack.c.l.b16 %v1053
          %v1090 = vunpack.c.l.b16 %v1054
          %v1091 = vunpack.c.l.b16 %v1055
          %v1092 = vunpack.c.l.b16 %v1056
          %v1093 = vunpack.c.l.b16 %v1057
          %v1094 = vunpack.c.l.b16 %v1058
          %v1095 = vunpack.c.l.b16 %v1059
          %v1096 = vunpack.c.l.b16 %v1060
          %v1097 = vunpack.c.l.b16 %v1061
          %v1098 = vunpack.c.l.b16 %v1062
          %v1099 = vunpack.c.l.b16 %v1063
          %v1100 = vunpack.c.l.b16 %v1064
          %v1101 = vunpack.c.l.b16 %v1065
          %v1102 = vunpack.c.l.b16 %v1066
          %v1103 = vunpack.c.l.b16 %v1067
          %v1104 = vunpack.c.l.b16 %v1068
          %v1105 = vpack.c.b16 %v1090, %v1089
          %v1106 = vpack.c.b16 %v1092, %v1091
          %v1107 = vpack.c.b16 %v1094, %v1093
          %v1108 = vpack.c.b16 %v1096, %v1095
          %v1109 = vpack.c.b16 %v1098, %v1097
          %v1110 = vpack.c.b16 %v1100, %v1099
          %v1111 = vpack.c.b16 %v1102, %v1101
          %v1112 = vpack.c.b16 %v1104, %v1103
          %1121 = vmatpush.bf16.msra.mxu0 %v1112
          %1122 = vmatpush.bf16.msra.mxu0 %v1111
          %1123 = vmatpush.bf16.msra.mxu0 %v1110
          %1124 = vmatpush.bf16.msra.mxu0 %v1109
          %1125 = vmatpush.bf16.msra.mxu0 %v1108
          %1126 = vmatpush.bf16.msra.mxu0 %v1107
          %1127 = vmatpush.bf16.msra.mxu0 %v1106
          %1128 = vmatpush.bf16.msra.mxu0 %v1105
          %1129 = vmatmul.bf16.gmra.mxu0 %v1045
          %v1130 = vpop.f32.mrf.mxu0
          %v1131 = vadd.f32 %v1071, %v1130
          %v1132 = vpop.f32.mrf.mxu0
          %v1133 = vadd.f32 %v1071, %v1132
          %1134 = vmatmul.bf16.gmra.mxu0 %v1046
          %v1135 = vpop.f32.mrf.mxu0
          %v1136 = vadd.f32 %v1071, %v1135
          %v1137 = vpop.f32.mrf.mxu0
          %v1138 = vadd.f32 %v1071, %v1137
          %1139 = vmatmul.bf16.gmra.mxu0 %v1047
          %v1140 = vpop.f32.mrf.mxu0
          %v1141 = vadd.f32 %v1071, %v1140
          %v1142 = vpop.f32.mrf.mxu0
          %v1143 = vadd.f32 %v1071, %v1142
          %1144 = vmatmul.bf16.gmra.mxu0 %v1048
          %v1145 = vpop.f32.mrf.mxu0
          %v1146 = vadd.f32 %v1071, %v1145
          %v1147 = vpop.f32.mrf.mxu0
          %v1148 = vadd.f32 %v1071, %v1147
          %1149 = vmatmul.bf16.gmra.mxu0 %v1049
          %v1150 = vpop.f32.mrf.mxu0
          %v1151 = vadd.f32 %v1071, %v1150
          %v1152 = vpop.f32.mrf.mxu0
          %v1153 = vadd.f32 %v1071, %v1152
          %1154 = vmatmul.bf16.gmra.mxu0 %v1050
          %v1155 = vpop.f32.mrf.mxu0
          %v1156 = vadd.f32 %v1071, %v1155
          %v1157 = vpop.f32.mrf.mxu0
          %v1158 = vadd.f32 %v1071, %v1157
          %1159 = vmatmul.bf16.gmra.mxu0 %v1051
          %v1160 = vpop.f32.mrf.mxu0
          %v1161 = vadd.f32 %v1071, %v1160
          %v1162 = vpop.f32.mrf.mxu0
          %v1163 = vadd.f32 %v1071, %v1162
          %1164 = vmatmul.bf16.gmra.mxu0 %v1052
          %v1165 = vpop.f32.mrf.mxu0
          %v1166 = vadd.f32 %v1071, %v1165
          %v1167 = vpop.f32.mrf.mxu0
          %v1168 = vadd.f32 %v1071, %v1167
          %1169 = vdwg.mxu0
          %v1170 = vmax.f32 %v1131, 0.0
          %v1171 = vmax.f32 %v1133, 0.0
          %v1172 = vmax.f32 %v1136, 0.0
          %v1173 = vmax.f32 %v1138, 0.0
          %v1174 = vmax.f32 %v1141, 0.0
          %v1175 = vmax.f32 %v1143, 0.0
          %v1176 = vmax.f32 %v1146, 0.0
          %v1177 = vmax.f32 %v1148, 0.0
          %v1178 = vmax.f32 %v1151, 0.0
          %v1179 = vmax.f32 %v1153, 0.0
          %v1180 = vmax.f32 %v1156, 0.0
          %v1181 = vmax.f32 %v1158, 0.0
          %v1182 = vmax.f32 %v1161, 0.0
          %v1183 = vmax.f32 %v1163, 0.0
          %v1184 = vmax.f32 %v1166, 0.0
          %v1185 = vmax.f32 %v1168, 0.0
          %v1186 = vunpack.c.l.bf16 %v848
          %v1187 = vunpack.c.l.bf16 %v849
          %v1188 = vunpack.c.l.bf16 %v850
          %v1189 = vunpack.c.l.bf16 %v851
          %v1190 = vunpack.c.l.bf16 %v852
          %v1191 = vunpack.c.l.bf16 %v853
          %v1192 = vunpack.c.l.bf16 %v854
          %v1193 = vunpack.c.l.bf16 %v855
          %v1194 = vunpack.c.l.bf16 %v856
          %v1195 = vunpack.c.l.bf16 %v857
          %v1196 = vunpack.c.l.bf16 %v858
          %v1197 = vunpack.c.l.bf16 %v859
          %v1198 = vunpack.c.l.bf16 %v860
          %v1199 = vunpack.c.l.bf16 %v861
          %v1200 = vunpack.c.l.bf16 %v862
          %v1201 = vunpack.c.l.bf16 %v863
          %v1202 = vadd.f32 %v1170, %v1186
          %v1203 = vadd.f32 %v1171, %v1187
          %v1204 = vadd.f32 %v1172, %v1188
          %v1205 = vadd.f32 %v1173, %v1189
          %v1206 = vadd.f32 %v1174, %v1190
          %v1207 = vadd.f32 %v1175, %v1191
          %v1208 = vadd.f32 %v1176, %v1192
          %v1209 = vadd.f32 %v1177, %v1193
          %v1210 = vadd.f32 %v1178, %v1194
          %v1211 = vadd.f32 %v1179, %v1195
          %v1212 = vadd.f32 %v1180, %v1196
          %v1213 = vadd.f32 %v1181, %v1197
          %v1214 = vadd.f32 %v1182, %v1198
          %v1215 = vadd.f32 %v1183, %v1199
          %v1216 = vadd.f32 %v1184, %v1200
          %v1217 = vadd.f32 %v1185, %v1201
          %v1218 = vld [vmem:[#allocation2] sm:$0xff]
          %v1219 = vld [vmem:[#allocation2 + $0x8] sm:$0xff]
          %v1220 = vld [vmem:[#allocation2 + $0x10] sm:$0xff]
          %v1221 = vld [vmem:[#allocation2 + $0x18] sm:$0xff]
          %v1222 = vld [vmem:[#allocation2 + $0x20] sm:$0xff]
          %v1223 = vld [vmem:[#allocation2 + $0x28] sm:$0xff]
          %v1224 = vld [vmem:[#allocation2 + $0x30] sm:$0xff]
          %v1225 = vld [vmem:[#allocation2 + $0x38] sm:$0xff]
          %v1226 = vld [vmem:[#allocation2 + $0x40] sm:$0xff]
          %v1227 = vld [vmem:[#allocation2 + $0x48] sm:$0xff]
          %v1228 = vld [vmem:[#allocation2 + $0x50] sm:$0xff]
          %v1229 = vld [vmem:[#allocation2 + $0x58] sm:$0xff]
          %v1230 = vld [vmem:[#allocation2 + $0x60] sm:$0xff]
          %v1231 = vld [vmem:[#allocation2 + $0x68] sm:$0xff]
          %v1232 = vld [vmem:[#allocation2 + $0x70] sm:$0xff]
          %v1233 = vld [vmem:[#allocation2 + $0x78] sm:$0xff]
          %v1234 = vadd.f32 %v1202, %v1218
          %v1235 = vadd.f32 %v1203, %v1219
          %v1236 = vadd.f32 %v1204, %v1220
          %v1237 = vadd.f32 %v1205, %v1221
          %v1238 = vadd.f32 %v1206, %v1222
          %v1239 = vadd.f32 %v1207, %v1223
          %v1240 = vadd.f32 %v1208, %v1224
          %v1241 = vadd.f32 %v1209, %v1225
          %v1242 = vadd.f32 %v1210, %v1226
          %v1243 = vadd.f32 %v1211, %v1227
          %v1244 = vadd.f32 %v1212, %v1228
          %v1245 = vadd.f32 %v1213, %v1229
          %v1246 = vadd.f32 %v1214, %v1230
          %v1247 = vadd.f32 %v1215, %v1231
          %v1248 = vadd.f32 %v1216, %v1232
          %v1249 = vadd.f32 %v1217, %v1233
          %v1250 = vld [vmem:[%s500] sm:$0x1]
          %v1252 = vperm.slane %v1250, 0
          %v1254 = vadd.f32 %v1234, %v1252
          %v1255 = vadd.f32 %v1235, %v1252
          %v1256 = vadd.f32 %v1236, %v1252
          %v1257 = vadd.f32 %v1237, %v1252
          %v1258 = vadd.f32 %v1238, %v1252
          %v1259 = vadd.f32 %v1239, %v1252
          %v1260 = vadd.f32 %v1240, %v1252
          %v1261 = vadd.f32 %v1241, %v1252
          %v1262 = vadd.f32 %v1242, %v1252
          %v1263 = vadd.f32 %v1243, %v1252
          %v1264 = vadd.f32 %v1244, %v1252
          %v1265 = vadd.f32 %v1245, %v1252
          %v1266 = vadd.f32 %v1246, %v1252
          %v1267 = vadd.f32 %v1247, %v1252
          %v1268 = vadd.f32 %v1248, %v1252
          %v1269 = vadd.f32 %v1249, %v1252
          %1270 = vst [vmem:[%s558] sm:$0xff] %v1254
          %1271 = vst [vmem:[%s558 + $0x8] sm:$0xff] %v1255
          %1272 = vst [vmem:[%s558 + $0x10] sm:$0xff] %v1256
          %1273 = vst [vmem:[%s558 + $0x18] sm:$0xff] %v1257
          %1274 = vst [vmem:[%s558 + $0x20] sm:$0xff] %v1258
          %1275 = vst [vmem:[%s558 + $0x28] sm:$0xff] %v1259
          %1276 = vst [vmem:[%s558 + $0x30] sm:$0xff] %v1260
          %1277 = vst [vmem:[%s558 + $0x38] sm:$0xff] %v1261
          %1278 = vst [vmem:[%s558 + $0x40] sm:$0xff] %v1262
          %1279 = vst [vmem:[%s558 + $0x48] sm:$0xff] %v1263
          %1280 = vst [vmem:[%s558 + $0x50] sm:$0xff] %v1264
          %1281 = vst [vmem:[%s558 + $0x58] sm:$0xff] %v1265
          %1282 = vst [vmem:[%s558 + $0x60] sm:$0xff] %v1266
          %1283 = vst [vmem:[%s558 + $0x68] sm:$0xff] %v1267
          %1284 = vst [vmem:[%s558 + $0x70] sm:$0xff] %v1268
          %1285 = vst [vmem:[%s558 + $0x78] sm:$0xff] %v1269
        $region88: #{adapted_clipseg_forward.3} parent=47 // pred_fallthru
          _
        %s1286 = sand.u32 %s257, 1
        %s1287 = scalar_lea.sflag [#allocation8], %s1286
        %s1288 = sand.u32 %s257, 1
        %s1289 = smul.addr %s1288, 128
        %s1290 = scalar_lea.vmem [#allocation18], %s1289
        // Predicated region
        $region89: #{adapted_clipseg_forward.3} parent=47 // pred_check
          %p1291 = pneg %p267
        $region90: #{adapted_clipseg_forward.3} parent=47 // pred_check_branch
          %1293 = sbr.rel (%p1291) target = $region92
        $region91: #{adapted_clipseg_forward.3} parent=47 // pred_region
          %s1294 = smul.u32 16, %s48
          %1296 = vsyncadd %s1287, 0
          %s1297 = smul.addr %s47, 32
          %s1298 = sadd.s32 %s1294, %s1297
          %s1299 = smul.addr %s1298, 8
          %s1300 = scalar_lea.hbm %s8, %s1299
          %s1301 = sshll.u32 %s1290, 4
          %s1302 = int_to_ptr.vmem [resolvable:$true] %s1301
          %s1303 = sshll.u32 %s1300, 4
          %s1304 = int_to_ptr.hbm [resolvable:$true] %s1303
          %1309 = dma.vmem_to_hbm [thread:$0]  %s1302, 2048, %s1304, %s1287, 128, 128, 8
        $region92: #{adapted_clipseg_forward.3} parent=47 // pred_fallthru
          _
      $region48: #{adapted_clipseg_forward.3} parent=5 // pred_fallthru
        _
      %p1310 = scmp.le.s32.totalorder 2, %s37
      // Predicated region
      $region93: #{adapted_clipseg_forward.3} parent=5 // pred_check
        %p1311 = pneg %p1310
      $region94: #{adapted_clipseg_forward.3} parent=5 // pred_check_branch
        %1313 = sbr.rel (%p1311) target = $region96
      $region95: #{adapted_clipseg_forward.3} parent=5 // pred_region
        %s1314 = ssub.s32 %s37, 2
        // Predicated region
        $region97: #{adapted_clipseg_forward.3} parent=95 // pred_check
          %p1315 = pneg %p273
        $region98: #{adapted_clipseg_forward.3} parent=95 // pred_check_branch
          %1317 = sbr.rel (%p1315) target = $region100
        $region99: #{adapted_clipseg_forward.3} parent=95 // pred_region
          %s1318 = sand.u32 %s258, 1
          %s1319 = scalar_lea.sflag [#allocation8], %s1318
          %s1320 = sand.u32 %s258, 1
          %s1321 = smul.addr %s1320, 128
          %s1322 = scalar_lea.vmem [#allocation18], %s1321
          %1324 = dma.done %s1319, 2048
        $region100: #{adapted_clipseg_forward.3} parent=95 // pred_fallthru
          _
      $region96: #{adapted_clipseg_forward.3} parent=5 // pred_fallthru
        _
    $region6: #{adapted_clipseg_forward.3} parent=1 // loop_footer
      %s41 = sadd.s32 1, %s37
    $region7: #{adapted_clipseg_forward.3} parent=1 // loop_footer_branch
      %36 = sbr.rel target = $region3
    $region8: #{adapted_clipseg_forward.3} parent=1 // loop_exit
      _
    %1325 = vsyncpa [#allocation7], 1
    %s1326 = scalar_lea.sflag [#allocation7], 1
    %1327 = vsyncpa %s1326, 1
    %1328 = vsyncpa [#allocation10], 1
    %s1329 = scalar_lea.sflag [#allocation10], 1
    %1330 = vsyncpa %s1329, 1
    %1331 = vsyncpa [#allocation13], 1
    %s1332 = scalar_lea.sflag [#allocation13], 1
    %1333 = vsyncpa %s1332, 1
    %1334 = vsyncpa [#allocation16], 1
    %s1335 = scalar_lea.sflag [#allocation16], 1
    %1336 = vsyncpa %s1335, 1
    %1337 = vsyncpa [#allocation8], 1
    %s1338 = scalar_lea.sflag [#allocation8], 1
    %1339 = vsyncpa %s1338, 1

</llo_original>
